<compile_context>
chip_gen: v6e
topology: v6e:2x2x1
jax: 0.10.0
libtpu: 0.0.40
codegen_flags: <defaults>
</compile_context>

<pallas_src>
import numpy as np
import jax
import jax.numpy as jnp
from jax.experimental import pallas as pl
from jax.experimental.pallas import tpu as pltpu

EPS = 1e-5  # PyTorch BatchNorm2d default eps


# ----------------------------------------------------------------------------
# Fused kernel: spatial attn + channel attn + combine + final 1x1 conv + sigmoid
# ----------------------------------------------------------------------------
def _harm_attn_kernel(x_ref, tw_ref, u_ref, wc1_ref, bc1_ref, wc2_ref, bc2_ref,
                      wft_ref, bf_ref, sb_ref, o_ref):
    xb = x_ref[...]                                    # (bb, C, HW) f32

    # Loop-invariant loads (single straight-line body; nothing re-emitted).
    tw = tw_ref[...]                                   # (HW, HoWo)
    u = u_ref[...]                                     # (HoWo, HW)
    wc1 = wc1_ref[...]                                 # (C, Cr)
    bc1 = bc1_ref[...]                                 # (1, Cr)
    wc2 = wc2_ref[...]                                 # (Cr, C)
    bc2 = bc2_ref[...]                                 # (1, C)
    wft = wft_ref[...]                                 # (C, C)   [c_in, c_out]
    bf = bf_ref[...]                                   # (C, 1)

    # ---- spatial attention, batched across the whole block ----
    sm = jnp.mean(xb, axis=1)                          # (bb, HW)
    s1 = jnp.maximum(
        jnp.dot(sm, tw, preferred_element_type=jnp.float32) + sb_ref[0], 0.0)
    spm = jnp.maximum(
        jnp.dot(s1, u, preferred_element_type=jnp.float32) + sb_ref[1], 0.0)
    # spm: (bb, HW)

    # ---- channel attention (tiny tensors -> broadcast+reduce on VPU) ----
    pooled = jnp.mean(xb, axis=2)                      # (bb, C)
    h1 = jnp.maximum(
        jnp.sum(pooled[:, :, None] * wc1[None, :, :], axis=1) + bc1, 0.0)   # (bb, Cr)
    ch = jnp.maximum(
        jnp.sum(h1[:, :, None] * wc2[None, :, :], axis=1) + bc2, 0.0)       # (bb, C)

    # ---- final 1x1 conv collapses on the rank-1 combine:
    #      z[b,o,h] = relu( (ch @ wfT)[b,o] * spm[b,h] + bf[o] ) ----
    chf = jnp.dot(ch, wft, preferred_element_type=jnp.float32)               # (bb, C)
    z = jnp.maximum(chf[:, :, None] * spm[:, None, :] + bf[None, :, :], 0.0) # (bb, C, HW)

    # sigmoid = EUP exp + approx reciprocal + one Newton step (f32 accuracy)
    e = jnp.exp(-z)
    den = 1.0 + e
    r = pl.reciprocal(den, approx=True)
    r = r * (2.0 - den * r)
    o_ref[...] = r


# ----------------------------------------------------------------------------
# Glue: structural matrices, parameter folding, pallas_call plumbing.
# ----------------------------------------------------------------------------
def _bilinear_matrix(n_out, n_in):
    """Interp matrix (n_out, n_in) for bilinear upsample, align_corners=True."""
    U = np.zeros((n_out, n_in), np.float32)
    for i in range(n_out):
        src = i * (n_in - 1) / (n_out - 1) if n_out > 1 else 0.0
        i0 = int(np.floor(src))
        f = src - i0
        if i0 + 1 < n_in:
            U[i, i0] += 1.0 - f
            U[i, i0 + 1] += f
        else:
            U[i, i0] += 1.0
    return U


def _bn_fold(g, be, m, v):
    s = g / jnp.sqrt(v + EPS)
    return s, be - m * s


def harm_attn_soft(x_nchw, p, *, batch_block=8):
    """SoftAttn forward (== HarmAttn forward) on NCHW input, NCHW output."""
    B, C, H, W = x_nchw.shape
    assert H % 2 == 0 and W % 2 == 0, "even spatial dims required (2x upsample == H,W)"
    Ho, Wo = H // 2, W // 2
    HW, HoWo = H * W, Ho * Wo
    Cr = p['ca_w1'].shape[0]

    # --- batch-block choice: big per-step blocks, but keep >=2 grid steps
    #     when B allows it so both v7x TensorCores get work. ---
    bb = min(batch_block, B) if B < 2 else min(batch_block, max(1, B // 2))
    bb = max(bb, 1)
    while B % bb:
        bb -= 1

    # --- structural constants (pure index bookkeeping, numpy) ---
    T9 = np.zeros((9, HW, HoWo), np.float32)      # 3x3 s2 p1 conv tap selectors
    for di in range(3):
        for dj in range(3):
            t = 3 * di + dj
            for io in range(Ho):
                r = 2 * io + di - 1
                if not (0 <= r < H):
                    continue
                for jo in range(Wo):
                    c = 2 * jo + dj - 1
                    if 0 <= c < W:
                        T9[t, r * W + c, io * Wo + jo] = 1.0
    Uh = _bilinear_matrix(H, Ho)                  # (H, Ho)
    Uw = _bilinear_matrix(W, Wo)                  # (W, Wo)
    U_np = np.einsum('iI,jJ->IJij', Uh, Uw).reshape(HoWo, HW)   # flat upsample

    # --- spatial branch: fold conv weights + eval-BN into the two matrices ---
    s1f, t1f = _bn_fold(p['sp_g1'], p['sp_be1'], p['sp_m1'], p['sp_v1'])
    s2f, t2f = _bn_fold(p['sp_g2'], p['sp_be2'], p['sp_m2'], p['sp_v2'])
    w33 = p['sp_w1'][0, 0] * s1f[0]                                   # (3,3)
    tw = jnp.tensordot(w33.reshape(9), jnp.asarray(T9), axes=1)       # (HW, HoWo)
    u = jnp.asarray(U_np) * (p['sp_w2'][0, 0, 0, 0] * s2f[0])         # (HoWo, HW)
    sb = jnp.concatenate([p['sp_b1'] * s1f + t1f,
                          p['sp_b2'] * s2f + t2f]).astype(jnp.float32)  # (2,) SMEM

    # --- channel branch: fold bias+BN; layouts chosen for batched use ---
    sc1, sh1 = _bn_fold(p['ca_g1'], p['ca_be1'], p['ca_m1'], p['ca_v1'])
    sc2, sh2 = _bn_fold(p['ca_g2'], p['ca_be2'], p['ca_m2'], p['ca_v2'])
    wc1k = sc1[None, :] * p['ca_w1'][:, :, 0, 0].T     # (C, Cr): in-C x out-Cr
    bc1k = (p['ca_b1'] * sc1 + sh1)[None, :]           # (1, Cr)
    wc2k = p['ca_w2'][:, :, 0, 0].T * sc2[None, :]     # (Cr, C): in-Cr x out-C
    bc2k = (p['ca_b2'] * sc2 + sh2)[None, :]           # (1, C)

    # --- final 1x1 conv: fold bias + BN; stored transposed (c_in, c_out) so
    #     chf = ch @ wfT gives sum_c ch[b,c]*scf[o]*fw[o,c] directly ---
    scf, shf = _bn_fold(p['f_g'], p['f_be'], p['f_m'], p['f_v'])
    wfT = (scf[:, None] * p['f_w'][:, :, 0, 0]).T      # (C, C) = [c_in, c_out]
    bfk = (p['f_b'] * scf + shf)[:, None]              # (C, 1)

    x_flat = x_nchw.reshape(B, C, HW).astype(jnp.float32)

    # VMEM plan: input + output block, each double-buffered, plus the resident
    # folded matrices.  (tw/u grow as H^2*W^2/4 — see TODO at top for large H,W.)
    block_bytes = bb * C * HW * 4
    weight_bytes = 4 * (HW * HoWo + HoWo * HW + 2 * C * Cr + 2 * C + C * C + Cr + 2)
    vmem_need = 4 * block_bytes + 2 * weight_bytes + (2 << 20)
    vmem_limit = int(min(max(vmem_need, 16 << 20), 32 << 20))

    y = pl.pallas_call(
        _harm_attn_kernel,
        out_shape=jax.ShapeDtypeStruct((B, C, HW), jnp.float32),
        grid_spec=pltpu.PrefetchScalarGridSpec(
            num_scalar_prefetch=0,
            grid=(B // bb,),
            in_specs=[
                pl.BlockSpec((bb, C, HW), lambda i: (i, 0, 0)),
                pl.BlockSpec((HW, HoWo), lambda i: (0, 0)),
                pl.BlockSpec((HoWo, HW), lambda i: (0, 0)),
                pl.BlockSpec((C, Cr), lambda i: (0, 0)),
                pl.BlockSpec((1, Cr), lambda i: (0, 0)),
                pl.BlockSpec((Cr, C), lambda i: (0, 0)),
                pl.BlockSpec((1, C), lambda i: (0, 0)),
                pl.BlockSpec((C, C), lambda i: (0, 0)),
                pl.BlockSpec((C, 1), lambda i: (0, 0)),
                pl.BlockSpec(memory_space=pltpu.MemorySpace.SMEM),
            ],
            out_specs=pl.BlockSpec((bb, C, HW), lambda i: (i, 0, 0))),
        compiler_params=pltpu.CompilerParams(
            dimension_semantics=("parallel",),   # batch-independent: megacore on v7x
            vmem_limit_bytes=vmem_limit),
    )(x_flat, tw, u, wc1k, bc1k, wc2k, bc2k, wfT, bfk, sb)
    return y.reshape(B, C, H, W)


# ----------------------------------------------------------------------------
# Deterministic synthetic parameters (shapes follow the PyTorch module).
# ----------------------------------------------------------------------------
def init_params(key, C, Cr):
    ki = iter(jax.random.split(key, 64))

    def nrm(shape, scale=0.3):
        return scale * jax.random.normal(next(ki), shape, jnp.float32)

    def bn_params(n):
        return (1.0 + 0.1 * jax.random.normal(next(ki), (n,), jnp.float32),
                0.1 * jax.random.normal(next(ki), (n,), jnp.float32),
                0.1 * jax.random.normal(next(ki), (n,), jnp.float32),
                jax.random.uniform(next(ki), (n,), jnp.float32, 0.5, 1.5))

    p = {}
    p['sp_w1'] = nrm((1, 1, 3, 3)); p['sp_b1'] = nrm((1,))
    p['sp_g1'], p['sp_be1'], p['sp_m1'], p['sp_v1'] = bn_params(1)
    p['sp_w2'] = nrm((1, 1, 1, 1)); p['sp_b2'] = nrm((1,))
    p['sp_g2'], p['sp_be2'], p['sp_m2'], p['sp_v2'] = bn_params(1)
    p['ca_w1'] = nrm((Cr, C, 1, 1)); p['ca_b1'] = nrm((Cr,))
    p['ca_g1'], p['ca_be1'], p['ca_m1'], p['ca_v1'] = bn_params(Cr)
    p['ca_w2'] = nrm((C, Cr, 1, 1)); p['ca_b2'] = nrm((C,))
    p['ca_g2'], p['ca_be2'], p['ca_m2'], p['ca_v2'] = bn_params(C)
    p['f_w'] = nrm((C, C, 1, 1)); p['f_b'] = nrm((C,))
    p['f_g'], p['f_be'], p['f_m'], p['f_v'] = bn_params(C)
    return p


# ----------------------------------------------------------------------------
# Pure-JAX NCHW reference of the PyTorch forward (for validation).
# ----------------------------------------------------------------------------
def reference_nchw(x, p):
    hp = jax.lax.Precision.HIGHEST

    def bn_relu(y, g, be, m, v):
        return jnp.maximum(
            (y - m[None, :, None, None]) / jnp.sqrt(v[None, :, None, None] + EPS)
            * g[None, :, None, None] + be[None, :, None, None], 0.0)

    def conv(y, w, b, s, pad):
        out = jax.lax.conv_general_dilated(
            y, w, window_strides=(s, s), padding=[(pad, pad), (pad, pad)],
            dimension_numbers=('NCHW', 'OIHW', 'NCHW'), precision=hp)
        return out + b[None, :, None, None]

    # spatial attention
    sm = jnp.mean(x, axis=1, keepdims=True)
    s1 = bn_relu(conv(sm, p['sp_w1'], p['sp_b1'], 2, 1),
                 p['sp_g1'], p['sp_be1'], p['sp_m1'], p['sp_v1'])
    Ho, Wo = s1.shape[2], s1.shape[3]
    Uh = jnp.asarray(_bilinear_matrix(2 * Ho, Ho))
    Uw = jnp.asarray(_bilinear_matrix(2 * Wo, Wo))
    up = jnp.einsum('ih,bchw,jw->bcij', Uh, s1, Uw, precision=hp)
    ysp = bn_relu(conv(up, p['sp_w2'], p['sp_b2'], 1, 0),
                  p['sp_g2'], p['sp_be2'], p['sp_m2'], p['sp_v2'])
    # channel attention
    pooled = jnp.mean(x, axis=(2, 3), keepdims=True)
    c1 = bn_relu(conv(pooled, p['ca_w1'], p['ca_b1'], 1, 0),
                 p['ca_g1'], p['ca_be1'], p['ca_m1'], p['ca_v1'])
    ych = bn_relu(conv(c1, p['ca_w2'], p['ca_b2'], 1, 0),
                  p['ca_g2'], p['ca_be2'], p['ca_m2'], p['ca_v2'])
    y = ysp * ych
    y = bn_relu(conv(y, p['f_w'], p['f_b'], 1, 0),
                p['f_g'], p['f_be'], p['f_m'], p['f_v'])
    return jax.nn.sigmoid(y)


if __name__ == "__main__":
    B, C, H, W = 16, 32, 16, 16         # in_channels must be divisible by 16
    Cr = C // 16
    key = jax.random.PRNGKey(0)
    kx, kp = jax.random.split(key)
    x_nchw = jax.random.normal(kx, (B, C, H, W), jnp.float32)
    params = init_params(kp, C, Cr)

    y = harm_attn_soft(x_nchw, params, batch_block=8)   # grid = (2,), 512 KiB/step
    y = jax.block_until_ready(y)

    ref = reference_nchw(x_nchw, params)
    max_err = float(jnp.max(jnp.abs(y - ref)))
    assert y.shape == (B, C, H, W), y.shape
    assert jnp.allclose(y, ref, atol=1e-3, rtol=1e-3), max_err
    print("KERNEL_OK")
</pallas_src>

<mosaic_0001>
module attributes {stable_mosaic.version = 11 : i64} {
  func.func @_harm_attn_kernel(%arg0: i32, %arg1: memref<8x32x256xf32, #tpu.memory_space<vmem>>, %arg2: memref<256x64xf32, #tpu.memory_space<vmem>>, %arg3: memref<64x256xf32, #tpu.memory_space<vmem>>, %arg4: memref<32x2xf32, #tpu.memory_space<vmem>>, %arg5: memref<1x2xf32, #tpu.memory_space<vmem>>, %arg6: memref<2x32xf32, #tpu.memory_space<vmem>>, %arg7: memref<1x32xf32, #tpu.memory_space<vmem>>, %arg8: memref<32x32xf32, #tpu.memory_space<vmem>>, %arg9: memref<32x1xf32, #tpu.memory_space<vmem>>, %arg10: memref<2xf32, #tpu.memory_space<smem>>, %arg11: memref<8x32x256xf32, #tpu.memory_space<vmem>>) attributes {dimension_semantics = [#tpu.dimension_semantics<parallel>], iteration_bounds = array<i64: 2>, scalar_prefetch = 0 : i64, scratch_operands = 0 : i64, tpu.core_type = #tpu.core_type<tc>, window_params = [{transform_indices = @transform_0, window_bounds = array<i64: 8, 32, 256>}, {pipeline_mode = #tpu.pipeline_mode<synchronous>, transform_indices = @transform_1, window_bounds = array<i64: 256, 64>}, {pipeline_mode = #tpu.pipeline_mode<synchronous>, transform_indices = @transform_2, window_bounds = array<i64: 64, 256>}, {pipeline_mode = #tpu.pipeline_mode<synchronous>, transform_indices = @transform_3, window_bounds = array<i64: 32, 2>}, {pipeline_mode = #tpu.pipeline_mode<synchronous>, transform_indices = @transform_4, window_bounds = array<i64: 1, 2>}, {pipeline_mode = #tpu.pipeline_mode<synchronous>, transform_indices = @transform_5, window_bounds = array<i64: 2, 32>}, {pipeline_mode = #tpu.pipeline_mode<synchronous>, transform_indices = @transform_6, window_bounds = array<i64: 1, 32>}, {pipeline_mode = #tpu.pipeline_mode<synchronous>, transform_indices = @transform_7, window_bounds = array<i64: 32, 32>}, {pipeline_mode = #tpu.pipeline_mode<synchronous>, transform_indices = @transform_8, window_bounds = array<i64: 32, 1>}, {transform_indices = @transform_9, window_bounds = array<i64: 2>}, {transform_indices = @transform_10, window_bounds = array<i64: 8, 32, 256>}]} {
    %c0 = arith.constant 0 : index
    %c0_0 = arith.constant 0 : index
    %c0_1 = arith.constant 0 : index
    %0 = vector.load %arg1[%c0, %c0_0, %c0_1] : memref<8x32x256xf32, #tpu.memory_space<vmem>>, vector<8x32x256xf32>
    %c0_2 = arith.constant 0 : index
    %c0_3 = arith.constant 0 : index
    %1 = vector.load %arg2[%c0_2, %c0_3] : memref<256x64xf32, #tpu.memory_space<vmem>>, vector<256x64xf32>
    %c0_4 = arith.constant 0 : index
    %c0_5 = arith.constant 0 : index
    %2 = vector.load %arg3[%c0_4, %c0_5] : memref<64x256xf32, #tpu.memory_space<vmem>>, vector<64x256xf32>
    %c0_6 = arith.constant 0 : index
    %c0_7 = arith.constant 0 : index
    %3 = vector.load %arg4[%c0_6, %c0_7] : memref<32x2xf32, #tpu.memory_space<vmem>>, vector<32x2xf32>
    %c0_8 = arith.constant 0 : index
    %c0_9 = arith.constant 0 : index
    %4 = vector.load %arg5[%c0_8, %c0_9] : memref<1x2xf32, #tpu.memory_space<vmem>>, vector<1x2xf32>
    %c0_10 = arith.constant 0 : index
    %c0_11 = arith.constant 0 : index
    %5 = vector.load %arg6[%c0_10, %c0_11] : memref<2x32xf32, #tpu.memory_space<vmem>>, vector<2x32xf32>
    %c0_12 = arith.constant 0 : index
    %c0_13 = arith.constant 0 : index
    %6 = vector.load %arg7[%c0_12, %c0_13] : memref<1x32xf32, #tpu.memory_space<vmem>>, vector<1x32xf32>
    %c0_14 = arith.constant 0 : index
    %c0_15 = arith.constant 0 : index
    %7 = vector.load %arg8[%c0_14, %c0_15] : memref<32x32xf32, #tpu.memory_space<vmem>>, vector<32x32xf32>
    %c0_16 = arith.constant 0 : index
    %c0_17 = arith.constant 0 : index
    %8 = vector.load %arg9[%c0_16, %c0_17] : memref<32x1xf32, #tpu.memory_space<vmem>>, vector<32x1xf32>
    %cst = arith.constant dense<0.000000e+00> : vector<8x256xf32>
    %9 = vector.multi_reduction <add>, %0, %cst [1] : vector<8x32x256xf32> to vector<8x256xf32>
    %cst_18 = arith.constant 3.200000e+01 : f32
    %10 = vector.broadcast %cst_18 : f32 to vector<8x256xf32>
    %11 = arith.divf %9, %10 : vector<8x256xf32>
    %cst_19 = arith.constant dense<0.000000e+00> : vector<8x64xf32>
    %12 = tpu.matmul %11, %1, %cst_19 {dimension_numbers = #tpu.dot_dimension_numbers<[1], [0], [0], [1], [0, 0, 1, 1], [], []>} : vector<8x256xf32>, vector<256x64xf32>, vector<8x64xf32> -> vector<8x64xf32>
    %c0_20 = arith.constant 0 : index
    %13 = memref.load %arg10[%c0_20] : memref<2xf32, #tpu.memory_space<smem>>
    %14 = vector.broadcast %13 : f32 to vector<8x64xf32>
    %15 = arith.addf %12, %14 : vector<8x64xf32>
    %cst_21 = arith.constant 0.000000e+00 : f32
    %16 = vector.broadcast %cst_21 : f32 to vector<8x64xf32>
    %17 = arith.maximumf %15, %16 : vector<8x64xf32>
    %cst_22 = arith.constant dense<0.000000e+00> : vector<8x256xf32>
    %18 = tpu.matmul %17, %2, %cst_22 {dimension_numbers = #tpu.dot_dimension_numbers<[1], [0], [0], [1], [0, 0, 1, 1], [], []>} : vector<8x64xf32>, vector<64x256xf32>, vector<8x256xf32> -> vector<8x256xf32>
    %c1 = arith.constant 1 : index
    %19 = memref.load %arg10[%c1] : memref<2xf32, #tpu.memory_space<smem>>
    %20 = vector.broadcast %19 : f32 to vector<8x256xf32>
    %21 = arith.addf %18, %20 : vector<8x256xf32>
    %cst_23 = arith.constant 0.000000e+00 : f32
    %22 = vector.broadcast %cst_23 : f32 to vector<8x256xf32>
    %23 = arith.maximumf %21, %22 : vector<8x256xf32>
    %cst_24 = arith.constant dense<0.000000e+00> : vector<8x32xf32>
    %24 = vector.multi_reduction <add>, %0, %cst_24 [2] : vector<8x32x256xf32> to vector<8x32xf32>
    %cst_25 = arith.constant 2.560000e+02 : f32
    %25 = vector.broadcast %cst_25 : f32 to vector<8x32xf32>
    %26 = arith.divf %24, %25 : vector<8x32xf32>
    %27 = vector.shape_cast %26 : vector<8x32xf32> to vector<8x32x1xf32>
    %28 = vector.shape_cast %3 : vector<32x2xf32> to vector<1x32x2xf32>
    %29 = vector.broadcast %27 : vector<8x32x1xf32> to vector<8x32x2xf32>
    %30 = vector.broadcast %28 : vector<1x32x2xf32> to vector<8x32x2xf32>
    %31 = arith.mulf %29, %30 : vector<8x32x2xf32>
    %cst_26 = arith.constant dense<0.000000e+00> : vector<8x2xf32>
    %32 = vector.multi_reduction <add>, %31, %cst_26 [1] : vector<8x32x2xf32> to vector<8x2xf32>
    %33 = vector.broadcast %4 : vector<1x2xf32> to vector<8x2xf32>
    %34 = arith.addf %32, %33 : vector<8x2xf32>
    %cst_27 = arith.constant 0.000000e+00 : f32
    %35 = vector.broadcast %cst_27 : f32 to vector<8x2xf32>
    %36 = arith.maximumf %34, %35 : vector<8x2xf32>
    %37 = vector.shape_cast %36 : vector<8x2xf32> to vector<8x2x1xf32>
    %38 = vector.shape_cast %5 : vector<2x32xf32> to vector<1x2x32xf32>
    %39 = vector.broadcast %37 : vector<8x2x1xf32> to vector<8x2x32xf32>
    %40 = vector.broadcast %38 : vector<1x2x32xf32> to vector<8x2x32xf32>
    %41 = arith.mulf %39, %40 : vector<8x2x32xf32>
    %cst_28 = arith.constant dense<0.000000e+00> : vector<8x32xf32>
    %42 = vector.multi_reduction <add>, %41, %cst_28 [1] : vector<8x2x32xf32> to vector<8x32xf32>
    %43 = vector.broadcast %6 : vector<1x32xf32> to vector<8x32xf32>
    %44 = arith.addf %42, %43 : vector<8x32xf32>
    %cst_29 = arith.constant 0.000000e+00 : f32
    %45 = vector.broadcast %cst_29 : f32 to vector<8x32xf32>
    %46 = arith.maximumf %44, %45 : vector<8x32xf32>
    %cst_30 = arith.constant dense<0.000000e+00> : vector<8x32xf32>
    %47 = tpu.matmul %46, %7, %cst_30 {dimension_numbers = #tpu.dot_dimension_numbers<[1], [0], [0], [1], [0, 0, 1, 1], [], []>} : vector<8x32xf32>, vector<32x32xf32>, vector<8x32xf32> -> vector<8x32xf32>
    %48 = vector.shape_cast %47 : vector<8x32xf32> to vector<8x32x1xf32>
    %49 = vector.shape_cast %23 : vector<8x256xf32> to vector<8x1x256xf32>
    %50 = vector.broadcast %48 : vector<8x32x1xf32> to vector<8x32x256xf32>
    %51 = vector.broadcast %49 : vector<8x1x256xf32> to vector<8x32x256xf32>
    %52 = arith.mulf %50, %51 : vector<8x32x256xf32>
    %53 = vector.shape_cast %8 : vector<32x1xf32> to vector<1x32x1xf32>
    %54 = vector.broadcast %53 : vector<1x32x1xf32> to vector<8x32x256xf32>
    %55 = arith.addf %52, %54 : vector<8x32x256xf32>
    %cst_31 = arith.constant 0.000000e+00 : f32
    %56 = vector.broadcast %cst_31 : f32 to vector<8x32x256xf32>
    %57 = arith.maximumf %55, %56 : vector<8x32x256xf32>
    %cst_32 = arith.constant 0.000000e+00 : f32
    %58 = vector.broadcast %cst_32 : f32 to vector<8x32x256xf32>
    %59 = arith.subf %58, %57 : vector<8x32x256xf32>
    %60 = math.exp %59 : vector<8x32x256xf32>
    %cst_33 = arith.constant 1.000000e+00 : f32
    %61 = vector.broadcast %cst_33 : f32 to vector<8x32x256xf32>
    %62 = arith.addf %61, %60 : vector<8x32x256xf32>
    %63 = tpu.reciprocal %62 {approx = true} : vector<8x32x256xf32> -> vector<8x32x256xf32>
    %64 = arith.mulf %62, %63 : vector<8x32x256xf32>
    %cst_34 = arith.constant 2.000000e+00 : f32
    %65 = vector.broadcast %cst_34 : f32 to vector<8x32x256xf32>
    %66 = arith.subf %65, %64 : vector<8x32x256xf32>
    %67 = arith.mulf %63, %66 : vector<8x32x256xf32>
    %c0_35 = arith.constant 0 : index
    %c0_36 = arith.constant 0 : index
    %c0_37 = arith.constant 0 : index
    %68 = vector.load %arg11[%c0_35, %c0_36, %c0_37] : memref<8x32x256xf32, #tpu.memory_space<vmem>>, vector<8x32x256xf32>
    tpu.vector_store %arg11[%c0_35, %c0_36, %c0_37], %67 {strides = array<i32>} : memref<8x32x256xf32, #tpu.memory_space<vmem>>, vector<8x32x256xf32>,
    return
  }
  func.func @transform_0(%arg0: i32) -> (i32, i32, i32) {
    %c0_i32 = arith.constant 0 : i32
    %c0_i32_0 = arith.constant 0 : i32
    %c0_i32_1 = arith.constant 0 : i32
    return %arg0, %c0_i32, %c0_i32_0 : i32, i32, i32
  }
  func.func @transform_1(%arg0: i32) -> (i32, i32) {
    %c0_i32 = arith.constant 0 : i32
    %c0_i32_0 = arith.constant 0 : i32
    %c0_i32_1 = arith.constant 0 : i32
    return %c0_i32, %c0_i32_0 : i32, i32
  }
  func.func @transform_2(%arg0: i32) -> (i32, i32) {
    %c0_i32 = arith.constant 0 : i32
    %c0_i32_0 = arith.constant 0 : i32
    %c0_i32_1 = arith.constant 0 : i32
    return %c0_i32, %c0_i32_0 : i32, i32
  }
  func.func @transform_3(%arg0: i32) -> (i32, i32) {
    %c0_i32 = arith.constant 0 : i32
    %c0_i32_0 = arith.constant 0 : i32
    %c0_i32_1 = arith.constant 0 : i32
    return %c0_i32, %c0_i32_0 : i32, i32
  }
  func.func @transform_4(%arg0: i32) -> (i32, i32) {
    %c0_i32 = arith.constant 0 : i32
    %c0_i32_0 = arith.constant 0 : i32
    %c0_i32_1 = arith.constant 0 : i32
    return %c0_i32, %c0_i32_0 : i32, i32
  }
  func.func @transform_5(%arg0: i32) -> (i32, i32) {
    %c0_i32 = arith.constant 0 : i32
    %c0_i32_0 = arith.constant 0 : i32
    %c0_i32_1 = arith.constant 0 : i32
    return %c0_i32, %c0_i32_0 : i32, i32
  }
  func.func @transform_6(%arg0: i32) -> (i32, i32) {
    %c0_i32 = arith.constant 0 : i32
    %c0_i32_0 = arith.constant 0 : i32
    %c0_i32_1 = arith.constant 0 : i32
    return %c0_i32, %c0_i32_0 : i32, i32
  }
  func.func @transform_7(%arg0: i32) -> (i32, i32) {
    %c0_i32 = arith.constant 0 : i32
    %c0_i32_0 = arith.constant 0 : i32
    %c0_i32_1 = arith.constant 0 : i32
    return %c0_i32, %c0_i32_0 : i32, i32
  }
  func.func @transform_8(%arg0: i32) -> (i32, i32) {
    %c0_i32 = arith.constant 0 : i32
    %c0_i32_0 = arith.constant 0 : i32
    %c0_i32_1 = arith.constant 0 : i32
    return %c0_i32, %c0_i32_0 : i32, i32
  }
  func.func @transform_9(%arg0: i32) -> i32 {
    %c0_i32 = arith.constant 0 : i32
    %c0_i32_0 = arith.constant 0 : i32
    return %c0_i32 : i32
  }
  func.func @transform_10(%arg0: i32) -> (i32, i32, i32) {
    %c0_i32 = arith.constant 0 : i32
    %c0_i32_0 = arith.constant 0 : i32
    %c0_i32_1 = arith.constant 0 : i32
    return %arg0, %c0_i32, %c0_i32_0 : i32, i32, i32
  }
}

</mosaic_0001>

<llo_original>
// kernel: tpu_custom_call.1
$region0: #{tpu_custom_call.1}
  #allocation0 [shape = 'u32[]', space=smem, size = 0x4, offset = 0x4, fixed_abs, tag = 'smem constant byte address 0x4 - core index']
  #allocation1 [shape = 'u32[144,128]{1,0:T(1,128)}', space=vmem, size = 0x12000, scoped, tag = 'internal scratch']
  %s0 = inlined_call_operand.hbm [shape: f32[16,32,256], index: 0, kind: input, shape index: {}]
  %s1 = inlined_call_operand.vmem [shape: f32[256,64], index: 1, kind: input, shape index: {}]
  %s2 = inlined_call_operand.vmem [shape: f32[64,256], index: 2, kind: input, shape index: {}]
  %s3 = inlined_call_operand.vmem [shape: f32[32,2], index: 3, kind: input, shape index: {}]
  %s4 = inlined_call_operand.vmem [shape: f32[1,2], index: 4, kind: input, shape index: {}]
  %s5 = inlined_call_operand.vmem [shape: f32[2,32], index: 5, kind: input, shape index: {}]
  %s6 = inlined_call_operand.vmem [shape: f32[1,32], index: 6, kind: input, shape index: {}]
  %s7 = inlined_call_operand.vmem [shape: f32[32,32], index: 7, kind: input, shape index: {}]
  %s8 = inlined_call_operand.vmem [shape: f32[32,1], index: 8, kind: input, shape index: {}]
  %s9 = inlined_call_operand.vmem [shape: f32[2], index: 9, kind: input, shape index: {}]
  %s10 = inlined_call_operand.hbm [shape: f32[16,32,256], index: 10, kind: output, shape index: {}]
  %s11 = sld [smem:[#allocation0]]
  $region81: #{tpu_custom_call.1} parent=0
    _
  %s13 = ssub.s32 1, %s11
  %s14 = scalar_select 0, %s13, %s11
  $region1: #{tpu_custom_call.1} parent=0
    #allocation2 [shape = 'u8[524288]{0}', space=vmem, size = 0x80000, scoped, tag = 'input window, operand 0']
    #allocation3 [shape = 's32[2]{0}', space=sflag, size = 0x8, scoped, tag = 'scoped memory for tpu_custom_call.1']
    #allocation4 [shape = 's32[2]{0}', space=sflag, size = 0x8, scoped, tag = 'scoped memory for tpu_custom_call.1']
    #allocation5 [shape = 's32[2]{0}', space=sflag, size = 0x8, scoped, tag = 'scoped memory for tpu_custom_call.1']
    #allocation6 [shape = 'u8[512]{0}', space=smem, size = 0x200, scoped, tag = 'input window, operand 9, single buffered']
    #allocation7 [shape = 'u8[524288]{0}', space=vmem, size = 0x80000, scoped, tag = 'output window, operand 0']
    %15 = vsyncpa [#allocation3], 0
    %s16 = scalar_lea.sflag [#allocation3], 1
    %17 = vsyncpa %s16, 0
    %18 = vsyncpa [#allocation5], 0
    %19 = vsyncpa [#allocation4], 0
    %s20 = scalar_lea.sflag [#allocation4], 1
    %21 = vsyncpa %s20, 0
    loop: start=0, step=1, limit=4
    $region2: #{tpu_custom_call.1} parent=1 // loop_pre_header
      _
    $region3: #{tpu_custom_call.1} parent=1 // loop_header
      %s23 = sphi 0, %s27
      %p24 = scmp.ge.s32.totalorder %s23, 4
      %s33 = sphi 0, %s35
      %s36 = sphi 0, %s33
      %s37 = sphi 0, %s36
      %s53 = sphi 0, %s37
      %s57 = sphi 0, %s57
      %s59 = sphi 0, %s57
      %s60 = sphi 0, %s59
      %s74 = sphi 0, %s60
      %s78 = sphi 0, %s78
      %s80 = sphi 0, %s78
      %s81 = sphi 0, %s80
      %s95 = sphi 0, %s81
      %s99 = sphi 0, %s99
      %s101 = sphi 0, %s99
      %s102 = sphi 0, %s101
      %s116 = sphi 0, %s102
      %s120 = sphi 0, %s120
      %s122 = sphi 0, %s120
      %s123 = sphi 0, %s122
      %s137 = sphi 0, %s123
      %s141 = sphi 0, %s141
      %s143 = sphi 0, %s141
      %s144 = sphi 0, %s143
      %s158 = sphi 0, %s144
      %s162 = sphi 0, %s162
      %s164 = sphi 0, %s162
      %s165 = sphi 0, %s164
      %s179 = sphi 0, %s165
      %s183 = sphi 0, %s183
      %s185 = sphi 0, %s183
      %s186 = sphi 0, %s185
      %s200 = sphi 0, %s186
      %s204 = sphi 0, %s204
      %s206 = sphi 0, %s204
      %s207 = sphi 0, %s206
      %s221 = sphi 0, %s207
      %s225 = sphi 0, %s225
      %s227 = sphi 0, %s225
      %s228 = sphi 0, %s227
      %s242 = sphi 0, %s228
      %s248 = sphi 0, %s250
      %s251 = sphi 0, %s248
      %s252 = sphi 0, %s251
      %s268 = sphi 0, %s252
    $region4: #{tpu_custom_call.1} parent=1 // loop_header_branch
      %26 = sbr.rel (%p24) target = $region8
    $region5: #{tpu_custom_call.1} parent=1 // loop_body
      %s28 = ssub.s32 %s23, 1
      %s29 = ssub.s32 %s23, 2
      %s30 = sadd.s32 %s23, 1
      %s31 = ssub.s32 %s23, %s30
      %p32 = scmp.eq.s32.totalorder %s31, 0
      %s34 = sadd.s32 %s33, 1
      %s35 = scalar_select %p32, %s33, %s34
      %p38 = pneg %p32
      %p39 = scmp.eq.s32.totalorder %s23, 1
      %p40 = por %p38, %p39
      %p41 = scmp.ne.s32.totalorder %s33, %s36
      %p42 = scmp.eq.s32.totalorder %s23, 0
      %p43 = por %p41, %p42
      %p44 = scmp.ne.s32.totalorder %s33, %s36
      %p45 = scmp.eq.s32.totalorder %s28, 1
      %p46 = por %p44, %p45
      %p47 = scmp.ne.s32.totalorder %s36, %s37
      %p48 = scmp.eq.s32.totalorder %s28, 0
      %p49 = por %p47, %p48
      %p50 = scmp.ne.s32.totalorder %s36, %s37
      %p51 = scmp.eq.s32.totalorder %s29, 1
      %p52 = por %p50, %p51
      %p54 = scmp.ne.s32.totalorder %s37, %s53
      %p55 = scmp.eq.s32.totalorder %s29, 0
      %p56 = por %p54, %p55
      %s58 = sadd.s32 %s57, 1
      %p61 = scmp.eq.s32.totalorder %s23, 1
      %p62 = scmp.ne.s32.totalorder %s57, %s59
      %p63 = scmp.eq.s32.totalorder %s23, 0
      %p64 = por %p62, %p63
      %p65 = scmp.ne.s32.totalorder %s57, %s59
      %p66 = scmp.eq.s32.totalorder %s28, 1
      %p67 = por %p65, %p66
      %p68 = scmp.ne.s32.totalorder %s59, %s60
      %p69 = scmp.eq.s32.totalorder %s28, 0
      %p70 = por %p68, %p69
      %p71 = scmp.ne.s32.totalorder %s59, %s60
      %p72 = scmp.eq.s32.totalorder %s29, 1
      %p73 = por %p71, %p72
      %p75 = scmp.ne.s32.totalorder %s60, %s74
      %p76 = scmp.eq.s32.totalorder %s29, 0
      %p77 = por %p75, %p76
      %s79 = sadd.s32 %s78, 1
      %p82 = scmp.eq.s32.totalorder %s23, 1
      %p83 = scmp.ne.s32.totalorder %s78, %s80
      %p84 = scmp.eq.s32.totalorder %s23, 0
      %p85 = por %p83, %p84
      %p86 = scmp.ne.s32.totalorder %s78, %s80
      %p87 = scmp.eq.s32.totalorder %s28, 1
      %p88 = por %p86, %p87
      %p89 = scmp.ne.s32.totalorder %s80, %s81
      %p90 = scmp.eq.s32.totalorder %s28, 0
      %p91 = por %p89, %p90
      %p92 = scmp.ne.s32.totalorder %s80, %s81
      %p93 = scmp.eq.s32.totalorder %s29, 1
      %p94 = por %p92, %p93
      %p96 = scmp.ne.s32.totalorder %s81, %s95
      %p97 = scmp.eq.s32.totalorder %s29, 0
      %p98 = por %p96, %p97
      %s100 = sadd.s32 %s99, 1
      %p103 = scmp.eq.s32.totalorder %s23, 1
      %p104 = scmp.ne.s32.totalorder %s99, %s101
      %p105 = scmp.eq.s32.totalorder %s23, 0
      %p106 = por %p104, %p105
      %p107 = scmp.ne.s32.totalorder %s99, %s101
      %p108 = scmp.eq.s32.totalorder %s28, 1
      %p109 = por %p107, %p108
      %p110 = scmp.ne.s32.totalorder %s101, %s102
      %p111 = scmp.eq.s32.totalorder %s28, 0
      %p112 = por %p110, %p111
      %p113 = scmp.ne.s32.totalorder %s101, %s102
      %p114 = scmp.eq.s32.totalorder %s29, 1
      %p115 = por %p113, %p114
      %p117 = scmp.ne.s32.totalorder %s102, %s116
      %p118 = scmp.eq.s32.totalorder %s29, 0
      %p119 = por %p117, %p118
      %s121 = sadd.s32 %s120, 1
      %p124 = scmp.eq.s32.totalorder %s23, 1
      %p125 = scmp.ne.s32.totalorder %s120, %s122
      %p126 = scmp.eq.s32.totalorder %s23, 0
      %p127 = por %p125, %p126
      %p128 = scmp.ne.s32.totalorder %s120, %s122
      %p129 = scmp.eq.s32.totalorder %s28, 1
      %p130 = por %p128, %p129
      %p131 = scmp.ne.s32.totalorder %s122, %s123
      %p132 = scmp.eq.s32.totalorder %s28, 0
      %p133 = por %p131, %p132
      %p134 = scmp.ne.s32.totalorder %s122, %s123
      %p135 = scmp.eq.s32.totalorder %s29, 1
      %p136 = por %p134, %p135
      %p138 = scmp.ne.s32.totalorder %s123, %s137
      %p139 = scmp.eq.s32.totalorder %s29, 0
      %p140 = por %p138, %p139
      %s142 = sadd.s32 %s141, 1
      %p145 = scmp.eq.s32.totalorder %s23, 1
      %p146 = scmp.ne.s32.totalorder %s141, %s143
      %p147 = scmp.eq.s32.totalorder %s23, 0
      %p148 = por %p146, %p147
      %p149 = scmp.ne.s32.totalorder %s141, %s143
      %p150 = scmp.eq.s32.totalorder %s28, 1
      %p151 = por %p149, %p150
      %p152 = scmp.ne.s32.totalorder %s143, %s144
      %p153 = scmp.eq.s32.totalorder %s28, 0
      %p154 = por %p152, %p153
      %p155 = scmp.ne.s32.totalorder %s143, %s144
      %p156 = scmp.eq.s32.totalorder %s29, 1
      %p157 = por %p155, %p156
      %p159 = scmp.ne.s32.totalorder %s144, %s158
      %p160 = scmp.eq.s32.totalorder %s29, 0
      %p161 = por %p159, %p160
      %s163 = sadd.s32 %s162, 1
      %p166 = scmp.eq.s32.totalorder %s23, 1
      %p167 = scmp.ne.s32.totalorder %s162, %s164
      %p168 = scmp.eq.s32.totalorder %s23, 0
      %p169 = por %p167, %p168
      %p170 = scmp.ne.s32.totalorder %s162, %s164
      %p171 = scmp.eq.s32.totalorder %s28, 1
      %p172 = por %p170, %p171
      %p173 = scmp.ne.s32.totalorder %s164, %s165
      %p174 = scmp.eq.s32.totalorder %s28, 0
      %p175 = por %p173, %p174
      %p176 = scmp.ne.s32.totalorder %s164, %s165
      %p177 = scmp.eq.s32.totalorder %s29, 1
      %p178 = por %p176, %p177
      %p180 = scmp.ne.s32.totalorder %s165, %s179
      %p181 = scmp.eq.s32.totalorder %s29, 0
      %p182 = por %p180, %p181
      %s184 = sadd.s32 %s183, 1
      %p187 = scmp.eq.s32.totalorder %s23, 1
      %p188 = scmp.ne.s32.totalorder %s183, %s185
      %p189 = scmp.eq.s32.totalorder %s23, 0
      %p190 = por %p188, %p189
      %p191 = scmp.ne.s32.totalorder %s183, %s185
      %p192 = scmp.eq.s32.totalorder %s28, 1
      %p193 = por %p191, %p192
      %p194 = scmp.ne.s32.totalorder %s185, %s186
      %p195 = scmp.eq.s32.totalorder %s28, 0
      %p196 = por %p194, %p195
      %p197 = scmp.ne.s32.totalorder %s185, %s186
      %p198 = scmp.eq.s32.totalorder %s29, 1
      %p199 = por %p197, %p198
      %p201 = scmp.ne.s32.totalorder %s186, %s200
      %p202 = scmp.eq.s32.totalorder %s29, 0
      %p203 = por %p201, %p202
      %s205 = sadd.s32 %s204, 1
      %p208 = scmp.eq.s32.totalorder %s23, 1
      %p209 = scmp.ne.s32.totalorder %s204, %s206
      %p210 = scmp.eq.s32.totalorder %s23, 0
      %p211 = por %p209, %p210
      %p212 = scmp.ne.s32.totalorder %s204, %s206
      %p213 = scmp.eq.s32.totalorder %s28, 1
      %p214 = por %p212, %p213
      %p215 = scmp.ne.s32.totalorder %s206, %s207
      %p216 = scmp.eq.s32.totalorder %s28, 0
      %p217 = por %p215, %p216
      %p218 = scmp.ne.s32.totalorder %s206, %s207
      %p219 = scmp.eq.s32.totalorder %s29, 1
      %p220 = por %p218, %p219
      %p222 = scmp.ne.s32.totalorder %s207, %s221
      %p223 = scmp.eq.s32.totalorder %s29, 0
      %p224 = por %p222, %p223
      %s226 = sadd.s32 %s225, 1
      %p229 = scmp.eq.s32.totalorder %s23, 1
      %p230 = scmp.ne.s32.totalorder %s225, %s227
      %p231 = scmp.eq.s32.totalorder %s23, 0
      %p232 = por %p230, %p231
      %p233 = scmp.ne.s32.totalorder %s225, %s227
      %p234 = scmp.eq.s32.totalorder %s28, 1
      %p235 = por %p233, %p234
      %p236 = scmp.ne.s32.totalorder %s227, %s228
      %p237 = scmp.eq.s32.totalorder %s28, 0
      %p238 = por %p236, %p237
      %p239 = scmp.ne.s32.totalorder %s227, %s228
      %p240 = scmp.eq.s32.totalorder %s29, 1
      %p241 = por %p239, %p240
      %p243 = scmp.ne.s32.totalorder %s228, %s242
      %p244 = scmp.eq.s32.totalorder %s29, 0
      %p245 = por %p243, %p244
      %s246 = ssub.s32 %s23, %s30
      %p247 = scmp.eq.s32.totalorder %s246, 0
      %s249 = sadd.s32 %s248, 1
      %s250 = scalar_select %p247, %s248, %s249
      %p253 = pneg %p247
      %p254 = scmp.eq.s32.totalorder %s23, 1
      %p255 = por %p253, %p254
      %p256 = scmp.ne.s32.totalorder %s248, %s251
      %p257 = scmp.eq.s32.totalorder %s23, 0
      %p258 = por %p256, %p257
      %p259 = scmp.ne.s32.totalorder %s248, %s251
      %p260 = scmp.eq.s32.totalorder %s28, 1
      %p261 = por %p259, %p260
      %p262 = scmp.ne.s32.totalorder %s251, %s252
      %p263 = scmp.eq.s32.totalorder %s28, 0
      %p264 = por %p262, %p263
      %p265 = scmp.ne.s32.totalorder %s251, %s252
      %p266 = scmp.eq.s32.totalorder %s29, 1
      %p267 = por %p265, %p266
      %p269 = scmp.ne.s32.totalorder %s252, %s268
      %p270 = scmp.eq.s32.totalorder %s29, 0
      %p271 = por %p269, %p270
      %p272 = scmp.le.s32.totalorder 1, %s23
      %p273 = scmp.lt.s32.totalorder %s23, 3
      %p274 = pnand %p272, %p273
      %p275 = pneg %p274
      // Predicated region
      $region9: #{tpu_custom_call.1} parent=5 // pred_check
        _
      $region10: #{tpu_custom_call.1} parent=5 // pred_check_branch
        %277 = sbr.rel (%p274) target = $region12
      $region11: #{tpu_custom_call.1} parent=5 // pred_region
        %s278 = ssub.s32 %s23, 1
        // Predicated region
        $region13: #{tpu_custom_call.1} parent=11 // pred_check
          %p279 = pneg %p70
        $region14: #{tpu_custom_call.1} parent=11 // pred_check_branch
          %281 = sbr.rel (%p279) target = $region16
        $region15: #{tpu_custom_call.1} parent=11 // pred_region
          _
        $region16: #{tpu_custom_call.1} parent=11 // pred_fallthru
          _
        // Predicated region
        $region17: #{tpu_custom_call.1} parent=11 // pred_check
          %p282 = pneg %p91
        $region18: #{tpu_custom_call.1} parent=11 // pred_check_branch
          %284 = sbr.rel (%p282) target = $region20
        $region19: #{tpu_custom_call.1} parent=11 // pred_region
          _
        $region20: #{tpu_custom_call.1} parent=11 // pred_fallthru
          _
        // Predicated region
        $region21: #{tpu_custom_call.1} parent=11 // pred_check
          %p285 = pneg %p112
        $region22: #{tpu_custom_call.1} parent=11 // pred_check_branch
          %287 = sbr.rel (%p285) target = $region24
        $region23: #{tpu_custom_call.1} parent=11 // pred_region
          _
        $region24: #{tpu_custom_call.1} parent=11 // pred_fallthru
          _
        // Predicated region
        $region25: #{tpu_custom_call.1} parent=11 // pred_check
          %p288 = pneg %p133
        $region26: #{tpu_custom_call.1} parent=11 // pred_check_branch
          %290 = sbr.rel (%p288) target = $region28
        $region27: #{tpu_custom_call.1} parent=11 // pred_region
          _
        $region28: #{tpu_custom_call.1} parent=11 // pred_fallthru
          _
        // Predicated region
        $region29: #{tpu_custom_call.1} parent=11 // pred_check
          %p291 = pneg %p154
        $region30: #{tpu_custom_call.1} parent=11 // pred_check_branch
          %293 = sbr.rel (%p291) target = $region32
        $region31: #{tpu_custom_call.1} parent=11 // pred_region
          _
        $region32: #{tpu_custom_call.1} parent=11 // pred_fallthru
          _
        // Predicated region
        $region33: #{tpu_custom_call.1} parent=11 // pred_check
          %p294 = pneg %p175
        $region34: #{tpu_custom_call.1} parent=11 // pred_check_branch
          %296 = sbr.rel (%p294) target = $region36
        $region35: #{tpu_custom_call.1} parent=11 // pred_region
          _
        $region36: #{tpu_custom_call.1} parent=11 // pred_fallthru
          _
        // Predicated region
        $region37: #{tpu_custom_call.1} parent=11 // pred_check
          %p297 = pneg %p196
        $region38: #{tpu_custom_call.1} parent=11 // pred_check_branch
          %299 = sbr.rel (%p297) target = $region40
        $region39: #{tpu_custom_call.1} parent=11 // pred_region
          _
        $region40: #{tpu_custom_call.1} parent=11 // pred_fallthru
          _
        // Predicated region
        $region41: #{tpu_custom_call.1} parent=11 // pred_check
          %p300 = pneg %p217
        $region42: #{tpu_custom_call.1} parent=11 // pred_check_branch
          %302 = sbr.rel (%p300) target = $region44
        $region43: #{tpu_custom_call.1} parent=11 // pred_region
          _
        $region44: #{tpu_custom_call.1} parent=11 // pred_fallthru
          _
        // Predicated region
        $region45: #{tpu_custom_call.1} parent=11 // pred_check
          %p303 = pneg %p238
        $region46: #{tpu_custom_call.1} parent=11 // pred_check_branch
          %305 = sbr.rel (%p303) target = $region48
        $region47: #{tpu_custom_call.1} parent=11 // pred_region
          %s307 = ssub.s32 16, 16
          %308 = vsyncadd [#allocation5], %s307
          %s310 = sshll.u32 %s9, 4
          %s311 = int_to_ptr.vmem [resolvable:$true] %s310
          %313 = dma.vmem_to_smem %s311, 16, [#allocation6], [#allocation5]
        $region48: #{tpu_custom_call.1} parent=11 // pred_fallthru
          _
      $region12: #{tpu_custom_call.1} parent=5 // pred_fallthru
        _
      %p314 = scmp.lt.s32.totalorder %s23, 2
      // Predicated region
      $region49: #{tpu_custom_call.1} parent=5 // pred_check
        %p315 = pneg %p314
      $region50: #{tpu_custom_call.1} parent=5 // pred_check_branch
        %317 = sbr.rel (%p315) target = $region52
      $region51: #{tpu_custom_call.1} parent=5 // pred_region
        // Predicated region
        $region53: #{tpu_custom_call.1} parent=51 // pred_check
          %p318 = pneg %p43
        $region54: #{tpu_custom_call.1} parent=51 // pred_check_branch
          %320 = sbr.rel (%p318) target = $region56
        $region55: #{tpu_custom_call.1} parent=51 // pred_region
          %s321 = sand.u32 %s33, 1
          %s322 = scalar_lea.sflag [#allocation3], %s321
          %s323 = sand.u32 %s33, 1
          %s324 = smul.addr %s323, 512
          %s325 = scalar_lea.vmem [#allocation2], %s324
          %s326 = smul.u32 8, %s23
          %s328 = ssub.s32 8192, 8192
          %329 = vsyncadd %s322, %s328
          %s330 = smul.addr %s326, 8
          %s331 = smul.addr %s330, 128
          %s332 = scalar_lea.hbm %s0, %s331
          %s333 = sshll.u32 %s325, 4
          %s334 = int_to_ptr.vmem [resolvable:$true] %s333
          %339 = dma.hbm_to_vmem [thread:$0]  %s332, 8192, %s334, %s322, 256, 256, 16
        $region56: #{tpu_custom_call.1} parent=51 // pred_fallthru
          _
      $region52: #{tpu_custom_call.1} parent=5 // pred_fallthru
        _
      %p340 = scmp.le.s32.totalorder 1, %s23
      %p341 = scmp.lt.s32.totalorder %s23, 3
      %p342 = pnand %p340, %p341
      %p343 = pneg %p342
      // Predicated region
      $region57: #{tpu_custom_call.1} parent=5 // pred_check
        _
      $region58: #{tpu_custom_call.1} parent=5 // pred_check_branch
        %345 = sbr.rel (%p342) target = $region60
      $region59: #{tpu_custom_call.1} parent=5 // pred_region
        %s346 = ssub.s32 %s23, 1
        %s347 = sand.u32 %s36, 1
        %s348 = scalar_lea.sflag [#allocation3], %s347
        %s349 = sand.u32 %s36, 1
        %s350 = smul.addr %s349, 512
        %s351 = scalar_lea.vmem [#allocation2], %s350
        // Predicated region
        $region61: #{tpu_custom_call.1} parent=59 // pred_check
          %p352 = pneg %p49
        $region62: #{tpu_custom_call.1} parent=59 // pred_check_branch
          %354 = sbr.rel (%p352) target = $region64
        $region63: #{tpu_custom_call.1} parent=59 // pred_region
          %355 = dma.done %s348, 8192
        $region64: #{tpu_custom_call.1} parent=59 // pred_fallthru
          _
        // Predicated region
        $region65: #{tpu_custom_call.1} parent=59 // pred_check
          %p356 = pneg %p238
        $region66: #{tpu_custom_call.1} parent=59 // pred_check_branch
          %358 = sbr.rel (%p356) target = $region68
        $region67: #{tpu_custom_call.1} parent=59 // pred_region
          %359 = dma.done [#allocation5], 16
        $region68: #{tpu_custom_call.1} parent=59 // pred_fallthru
          _
        %360 = sfence
        %s361 = sand.u32 %s36, 1
        %s362 = scalar_lea.sflag [#allocation3], %s361
        %s363 = sand.u32 %s36, 1
        %s364 = smul.addr %s363, 512
        %s365 = scalar_lea.vmem [#allocation2], %s364
        %p366 = pneg %p49
        %p367 = pneg %p46
        %p368 = pneg %p70
        %p369 = pneg %p67
        %p370 = pneg %p91
        %p371 = pneg %p88
        %p372 = pneg %p112
        %p373 = pneg %p109
        %p374 = pneg %p133
        %p375 = pneg %p130
        %p376 = pneg %p154
        %p377 = pneg %p151
        %p378 = pneg %p175
        %p379 = pneg %p172
        %p380 = pneg %p196
        %p381 = pneg %p193
        %p382 = pneg %p217
        %p383 = pneg %p214
        %p384 = pneg %p238
        %p385 = pneg %p235
        %p386 = pneg %p264
        %p387 = pneg %p261
        %s388 = sand.u32 %s251, 1
        %s389 = scalar_lea.sflag [#allocation4], %s388
        %s390 = sand.u32 %s251, 1
        %s391 = smul.addr %s390, 512
        %s392 = scalar_lea.vmem [#allocation7], %s391
        %s393 = smul.u32 8, %s28
        %s394 = smul.u32 8, %s28
        %v395 = vld [vmem:[%s351] sm:$0xff]
        %v396 = vld [vmem:[%s351 + $0x8] sm:$0xff]
        %v397 = vld [vmem:[%s351 + $0x10] sm:$0xff]
        %v398 = vld [vmem:[%s351 + $0x18] sm:$0xff]
        %v399 = vld [vmem:[%s351 + $0x20] sm:$0xff]
        %v400 = vld [vmem:[%s351 + $0x28] sm:$0xff]
        %v401 = vld [vmem:[%s351 + $0x30] sm:$0xff]
        %v402 = vld [vmem:[%s351 + $0x38] sm:$0xff]
        %v403 = vld [vmem:[%s351 + $0x40] sm:$0xff]
        %v404 = vld [vmem:[%s351 + $0x48] sm:$0xff]
        %v405 = vld [vmem:[%s351 + $0x50] sm:$0xff]
        %v406 = vld [vmem:[%s351 + $0x58] sm:$0xff]
        %v407 = vld [vmem:[%s351 + $0x60] sm:$0xff]
        %v408 = vld [vmem:[%s351 + $0x68] sm:$0xff]
        %v409 = vld [vmem:[%s351 + $0x70] sm:$0xff]
        %v410 = vld [vmem:[%s351 + $0x78] sm:$0xff]
        %v411 = vld [vmem:[%s351 + $0x80] sm:$0xff]
        %v412 = vld [vmem:[%s351 + $0x88] sm:$0xff]
        %v413 = vld [vmem:[%s351 + $0x90] sm:$0xff]
        %v414 = vld [vmem:[%s351 + $0x98] sm:$0xff]
        %v415 = vld [vmem:[%s351 + $0xa0] sm:$0xff]
        %v416 = vld [vmem:[%s351 + $0xa8] sm:$0xff]
        %v417 = vld [vmem:[%s351 + $0xb0] sm:$0xff]
        %v418 = vld [vmem:[%s351 + $0xb8] sm:$0xff]
        %v419 = vld [vmem:[%s351 + $0xc0] sm:$0xff]
        %v420 = vld [vmem:[%s351 + $0xc8] sm:$0xff]
        %v421 = vld [vmem:[%s351 + $0xd0] sm:$0xff]
        %v422 = vld [vmem:[%s351 + $0xd8] sm:$0xff]
        %v423 = vld [vmem:[%s351 + $0xe0] sm:$0xff]
        %v424 = vld [vmem:[%s351 + $0xe8] sm:$0xff]
        %v425 = vld [vmem:[%s351 + $0xf0] sm:$0xff]
        %v426 = vld [vmem:[%s351 + $0xf8] sm:$0xff]
        %v427 = vld [vmem:[%s351 + $0x100] sm:$0xff]
        %v428 = vld [vmem:[%s351 + $0x108] sm:$0xff]
        %v429 = vld [vmem:[%s351 + $0x110] sm:$0xff]
        %v430 = vld [vmem:[%s351 + $0x118] sm:$0xff]
        %v431 = vld [vmem:[%s351 + $0x120] sm:$0xff]
        %v432 = vld [vmem:[%s351 + $0x128] sm:$0xff]
        %v433 = vld [vmem:[%s351 + $0x130] sm:$0xff]
        %v434 = vld [vmem:[%s351 + $0x138] sm:$0xff]
        %v435 = vld [vmem:[%s351 + $0x140] sm:$0xff]
        %v436 = vld [vmem:[%s351 + $0x148] sm:$0xff]
        %v437 = vld [vmem:[%s351 + $0x150] sm:$0xff]
        %v438 = vld [vmem:[%s351 + $0x158] sm:$0xff]
        %v439 = vld [vmem:[%s351 + $0x160] sm:$0xff]
        %v440 = vld [vmem:[%s351 + $0x168] sm:$0xff]
        %v441 = vld [vmem:[%s351 + $0x170] sm:$0xff]
        %v442 = vld [vmem:[%s351 + $0x178] sm:$0xff]
        %v443 = vld [vmem:[%s351 + $0x180] sm:$0xff]
        %v444 = vld [vmem:[%s351 + $0x188] sm:$0xff]
        %v445 = vld [vmem:[%s351 + $0x190] sm:$0xff]
        %v446 = vld [vmem:[%s351 + $0x198] sm:$0xff]
        %v447 = vld [vmem:[%s351 + $0x1a0] sm:$0xff]
        %v448 = vld [vmem:[%s351 + $0x1a8] sm:$0xff]
        %v449 = vld [vmem:[%s351 + $0x1b0] sm:$0xff]
        %v450 = vld [vmem:[%s351 + $0x1b8] sm:$0xff]
        %v451 = vld [vmem:[%s351 + $0x1c0] sm:$0xff]
        %v452 = vld [vmem:[%s351 + $0x1c8] sm:$0xff]
        %v453 = vld [vmem:[%s351 + $0x1d0] sm:$0xff]
        %v454 = vld [vmem:[%s351 + $0x1d8] sm:$0xff]
        %v455 = vld [vmem:[%s351 + $0x1e0] sm:$0xff]
        %v456 = vld [vmem:[%s351 + $0x1e8] sm:$0xff]
        %v457 = vld [vmem:[%s351 + $0x1f0] sm:$0xff]
        %v458 = vld [vmem:[%s351 + $0x1f8] sm:$0xff]
        %v459 = vld [vmem:[%s1] sm:$0xff]
        %v460 = vld [vmem:[%s1 + $0x8] sm:$0xff]
        %v461 = vld [vmem:[%s1 + $0x10] sm:$0xff]
        %v462 = vld [vmem:[%s1 + $0x18] sm:$0xff]
        %v463 = vld [vmem:[%s1 + $0x20] sm:$0xff]
        %v464 = vld [vmem:[%s1 + $0x28] sm:$0xff]
        %v465 = vld [vmem:[%s1 + $0x30] sm:$0xff]
        %v466 = vld [vmem:[%s1 + $0x38] sm:$0xff]
        %v467 = vld [vmem:[%s1 + $0x40] sm:$0xff]
        %v468 = vld [vmem:[%s1 + $0x48] sm:$0xff]
        %v469 = vld [vmem:[%s1 + $0x50] sm:$0xff]
        %v470 = vld [vmem:[%s1 + $0x58] sm:$0xff]
        %v471 = vld [vmem:[%s1 + $0x60] sm:$0xff]
        %v472 = vld [vmem:[%s1 + $0x68] sm:$0xff]
        %v473 = vld [vmem:[%s1 + $0x70] sm:$0xff]
        %v474 = vld [vmem:[%s1 + $0x78] sm:$0xff]
        %v475 = vld [vmem:[%s1 + $0x80] sm:$0xff]
        %v476 = vld [vmem:[%s1 + $0x88] sm:$0xff]
        %v477 = vld [vmem:[%s1 + $0x90] sm:$0xff]
        %v478 = vld [vmem:[%s1 + $0x98] sm:$0xff]
        %v479 = vld [vmem:[%s1 + $0xa0] sm:$0xff]
        %v480 = vld [vmem:[%s1 + $0xa8] sm:$0xff]
        %v481 = vld [vmem:[%s1 + $0xb0] sm:$0xff]
        %v482 = vld [vmem:[%s1 + $0xb8] sm:$0xff]
        %v483 = vld [vmem:[%s1 + $0xc0] sm:$0xff]
        %v484 = vld [vmem:[%s1 + $0xc8] sm:$0xff]
        %v485 = vld [vmem:[%s1 + $0xd0] sm:$0xff]
        %v486 = vld [vmem:[%s1 + $0xd8] sm:$0xff]
        %v487 = vld [vmem:[%s1 + $0xe0] sm:$0xff]
        %v488 = vld [vmem:[%s1 + $0xe8] sm:$0xff]
        %v489 = vld [vmem:[%s1 + $0xf0] sm:$0xff]
        %v490 = vld [vmem:[%s1 + $0xf8] sm:$0xff]
        %v491 = vld [vmem:[%s2] sm:$0xff]
        %v492 = vld [vmem:[%s2 + $0x8] sm:$0xff]
        %v493 = vld [vmem:[%s2 + $0x10] sm:$0xff]
        %v494 = vld [vmem:[%s2 + $0x18] sm:$0xff]
        %v495 = vld [vmem:[%s2 + $0x20] sm:$0xff]
        %v496 = vld [vmem:[%s2 + $0x28] sm:$0xff]
        %v497 = vld [vmem:[%s2 + $0x30] sm:$0xff]
        %v498 = vld [vmem:[%s2 + $0x38] sm:$0xff]
        %v499 = vld [vmem:[%s2 + $0x40] sm:$0xff]
        %v500 = vld [vmem:[%s2 + $0x48] sm:$0xff]
        %v501 = vld [vmem:[%s2 + $0x50] sm:$0xff]
        %v502 = vld [vmem:[%s2 + $0x58] sm:$0xff]
        %v503 = vld [vmem:[%s2 + $0x60] sm:$0xff]
        %v504 = vld [vmem:[%s2 + $0x68] sm:$0xff]
        %v505 = vld [vmem:[%s2 + $0x70] sm:$0xff]
        %v506 = vld [vmem:[%s2 + $0x78] sm:$0xff]
        %v507 = vld [vmem:[%s3] sm:$0xff]
        %v508 = vld [vmem:[%s3 + $0x8] sm:$0xff]
        %v509 = vld [vmem:[%s3 + $0x10] sm:$0xff]
        %v510 = vld [vmem:[%s3 + $0x18] sm:$0xff]
        %v511 = vld [vmem:[%s4] sm:$0x1]
        %v512 = vld [vmem:[%s5] sm:$0x3]
        %v513 = vld [vmem:[%s6] sm:$0x1]
        %v514 = vld [vmem:[%s7] sm:$0xff]
        %v515 = vld [vmem:[%s7 + $0x8] sm:$0xff]
        %v516 = vld [vmem:[%s7 + $0x10] sm:$0xff]
        %v517 = vld [vmem:[%s7 + $0x18] sm:$0xff]
        %v518 = vld [vmem:[%s8] sm:$0xff]
        %v519 = vld [vmem:[%s8 + $0x8] sm:$0xff]
        %v520 = vld [vmem:[%s8 + $0x10] sm:$0xff]
        %v521 = vld [vmem:[%s8 + $0x18] sm:$0xff]
        %v522 = vadd.f32 %v395, %v397
        %v523 = vadd.f32 %v522, %v399
        %v524 = vadd.f32 %v523, %v401
        %v525 = vrot.slane %v524, 4
        %v526 = vadd.f32 %v524, %v525
        %v527 = vrot.slane %v526, 2
        %v528 = vadd.f32 %v526, %v527
        %v529 = vrot.slane %v528, 1
        %v530 = vadd.f32 %v528, %v529
        %v531 = vadd.f32 %v396, %v398
        %v532 = vadd.f32 %v531, %v400
        %v533 = vadd.f32 %v532, %v402
        %v534 = vrot.slane %v533, 4
        %v535 = vadd.f32 %v533, %v534
        %v536 = vrot.slane %v535, 2
        %v537 = vadd.f32 %v535, %v536
        %v538 = vrot.slane %v537, 1
        %v539 = vadd.f32 %v537, %v538
        %v540 = vadd.f32 %v403, %v405
        %v541 = vadd.f32 %v540, %v407
        %v542 = vadd.f32 %v541, %v409
        %v543 = vrot.slane %v542, 4
        %v544 = vadd.f32 %v542, %v543
        %v545 = vrot.slane %v544, 2
        %v546 = vadd.f32 %v544, %v545
        %v547 = vrot.slane %v546, 1
        %v548 = vadd.f32 %v546, %v547
        %v549 = vadd.f32 %v404, %v406
        %v550 = vadd.f32 %v549, %v408
        %v551 = vadd.f32 %v550, %v410
        %v552 = vrot.slane %v551, 4
        %v553 = vadd.f32 %v551, %v552
        %v554 = vrot.slane %v553, 2
        %v555 = vadd.f32 %v553, %v554
        %v556 = vrot.slane %v555, 1
        %v557 = vadd.f32 %v555, %v556
        %v558 = vadd.f32 %v411, %v413
        %v559 = vadd.f32 %v558, %v415
        %v560 = vadd.f32 %v559, %v417
        %v561 = vrot.slane %v560, 4
        %v562 = vadd.f32 %v560, %v561
        %v563 = vrot.slane %v562, 2
        %v564 = vadd.f32 %v562, %v563
        %v565 = vrot.slane %v564, 1
        %v566 = vadd.f32 %v564, %v565
        %v567 = vadd.f32 %v412, %v414
        %v568 = vadd.f32 %v567, %v416
        %v569 = vadd.f32 %v568, %v418
        %v570 = vrot.slane %v569, 4
        %v571 = vadd.f32 %v569, %v570
        %v572 = vrot.slane %v571, 2
        %v573 = vadd.f32 %v571, %v572
        %v574 = vrot.slane %v573, 1
        %v575 = vadd.f32 %v573, %v574
        %v576 = vadd.f32 %v419, %v421
        %v577 = vadd.f32 %v576, %v423
        %v578 = vadd.f32 %v577, %v425
        %v579 = vrot.slane %v578, 4
        %v580 = vadd.f32 %v578, %v579
        %v581 = vrot.slane %v580, 2
        %v582 = vadd.f32 %v580, %v581
        %v583 = vrot.slane %v582, 1
        %v584 = vadd.f32 %v582, %v583
        %v585 = vadd.f32 %v420, %v422
        %v586 = vadd.f32 %v585, %v424
        %v587 = vadd.f32 %v586, %v426
        %v588 = vrot.slane %v587, 4
        %v589 = vadd.f32 %v587, %v588
        %v590 = vrot.slane %v589, 2
        %v591 = vadd.f32 %v589, %v590
        %v592 = vrot.slane %v591, 1
        %v593 = vadd.f32 %v591, %v592
        %v594 = vadd.f32 %v427, %v429
        %v595 = vadd.f32 %v594, %v431
        %v596 = vadd.f32 %v595, %v433
        %v597 = vrot.slane %v596, 4
        %v598 = vadd.f32 %v596, %v597
        %v599 = vrot.slane %v598, 2
        %v600 = vadd.f32 %v598, %v599
        %v601 = vrot.slane %v600, 1
        %v602 = vadd.f32 %v600, %v601
        %v603 = vadd.f32 %v428, %v430
        %v604 = vadd.f32 %v603, %v432
        %v605 = vadd.f32 %v604, %v434
        %v606 = vrot.slane %v605, 4
        %v607 = vadd.f32 %v605, %v606
        %v608 = vrot.slane %v607, 2
        %v609 = vadd.f32 %v607, %v608
        %v610 = vrot.slane %v609, 1
        %v611 = vadd.f32 %v609, %v610
        %v612 = vadd.f32 %v435, %v437
        %v613 = vadd.f32 %v612, %v439
        %v614 = vadd.f32 %v613, %v441
        %v615 = vrot.slane %v614, 4
        %v616 = vadd.f32 %v614, %v615
        %v617 = vrot.slane %v616, 2
        %v618 = vadd.f32 %v616, %v617
        %v619 = vrot.slane %v618, 1
        %v620 = vadd.f32 %v618, %v619
        %v621 = vadd.f32 %v436, %v438
        %v622 = vadd.f32 %v621, %v440
        %v623 = vadd.f32 %v622, %v442
        %v624 = vrot.slane %v623, 4
        %v625 = vadd.f32 %v623, %v624
        %v626 = vrot.slane %v625, 2
        %v627 = vadd.f32 %v625, %v626
        %v628 = vrot.slane %v627, 1
        %v629 = vadd.f32 %v627, %v628
        %v630 = vadd.f32 %v443, %v445
        %v631 = vadd.f32 %v630, %v447
        %v632 = vadd.f32 %v631, %v449
        %v633 = vrot.slane %v632, 4
        %v634 = vadd.f32 %v632, %v633
        %v635 = vrot.slane %v634, 2
        %v636 = vadd.f32 %v634, %v635
        %v637 = vrot.slane %v636, 1
        %v638 = vadd.f32 %v636, %v637
        %v639 = vadd.f32 %v444, %v446
        %v640 = vadd.f32 %v639, %v448
        %v641 = vadd.f32 %v640, %v450
        %v642 = vrot.slane %v641, 4
        %v643 = vadd.f32 %v641, %v642
        %v644 = vrot.slane %v643, 2
        %v645 = vadd.f32 %v643, %v644
        %v646 = vrot.slane %v645, 1
        %v647 = vadd.f32 %v645, %v646
        %v648 = vadd.f32 %v451, %v453
        %v649 = vadd.f32 %v648, %v455
        %v650 = vadd.f32 %v649, %v457
        %v651 = vrot.slane %v650, 4
        %v652 = vadd.f32 %v650, %v651
        %v653 = vrot.slane %v652, 2
        %v654 = vadd.f32 %v652, %v653
        %v655 = vrot.slane %v654, 1
        %v656 = vadd.f32 %v654, %v655
        %v657 = vadd.f32 %v452, %v454
        %v658 = vadd.f32 %v657, %v456
        %v659 = vadd.f32 %v658, %v458
        %v660 = vrot.slane %v659, 4
        %v661 = vadd.f32 %v659, %v660
        %v662 = vrot.slane %v661, 2
        %v663 = vadd.f32 %v661, %v662
        %v664 = vrot.slane %v663, 1
        %v665 = vadd.f32 %v663, %v664
        %v666 = vrcp.pop 32.0
        %v667 = vmul.f32 %v530, %v666
        %v668 = vmul.f32 %v539, %v666
        %v669 = vmul.f32 %v548, %v666
        %v670 = vmul.f32 %v557, %v666
        %v671 = vmul.f32 %v566, %v666
        %v672 = vmul.f32 %v575, %v666
        %v673 = vmul.f32 %v584, %v666
        %v674 = vmul.f32 %v593, %v666
        %v675 = vmul.f32 %v602, %v666
        %v676 = vmul.f32 %v611, %v666
        %v677 = vmul.f32 %v620, %v666
        %v678 = vmul.f32 %v629, %v666
        %v679 = vmul.f32 %v638, %v666
        %v680 = vmul.f32 %v647, %v666
        %v681 = vmul.f32 %v656, %v666
        %v682 = vmul.f32 %v665, %v666
        %s683 = sld [smem:[#allocation6]]
        %v684 = vstv %s683
        %vm701 = vcmask 1041409
        %v702 = vsel %vm701, %v669, %v667
        %vm703 = vcmask 1042434
        %v704 = vsel %vm703, %v671, %v702
        %vm705 = vcmask 1043459
        %v706 = vsel %vm705, %v673, %v704
        %vm707 = vcmask 1044484
        %v708 = vsel %vm707, %v675, %v706
        %vm709 = vcmask 1045509
        %v710 = vsel %vm709, %v677, %v708
        %vm711 = vcmask 1046534
        %v712 = vsel %vm711, %v679, %v710
        %vm713 = vcmask 1047559
        %v714 = vsel %vm713, %v681, %v712
        %v715 = vsel %vm701, %v670, %v668
        %v716 = vsel %vm703, %v672, %v715
        %v717 = vsel %vm705, %v674, %v716
        %v718 = vsel %vm707, %v676, %v717
        %v719 = vsel %vm709, %v678, %v718
        %v720 = vsel %vm711, %v680, %v719
        %v721 = vsel %vm713, %v682, %v720
        %724 = vmatprep.subr.mxu0 0.0
        %725 = vmatpush1.msra.mxu0 %v474
        %726 = vmatprep.subr.mxu0 0.0
        %727 = vmatpush1.msra.mxu0 %v473
        %728 = vmatprep.subr.mxu0 0.0
        %729 = vmatpush1.msra.mxu0 %v472
        %730 = vmatprep.subr.mxu0 0.0
        %731 = vmatpush1.msra.mxu0 %v471
        %732 = vmatprep.subr.mxu0 0.0
        %733 = vmatpush1.msra.mxu0 %v470
        %734 = vmatprep.subr.mxu0 0.0
        %735 = vmatpush1.msra.mxu0 %v469
        %736 = vmatprep.subr.mxu0 0.0
        %737 = vmatpush1.msra.mxu0 %v468
        %738 = vmatprep.subr.mxu0 0.0
        %739 = vmatpush1.msra.mxu0 %v467
        %740 = vmatprep.subr.mxu0 0.0
        %741 = vmatpush1.msra.mxu0 %v466
        %742 = vmatprep.subr.mxu0 0.0
        %743 = vmatpush1.msra.mxu0 %v465
        %744 = vmatprep.subr.mxu0 0.0
        %745 = vmatpush1.msra.mxu0 %v464
        %746 = vmatprep.subr.mxu0 0.0
        %747 = vmatpush1.msra.mxu0 %v463
        %748 = vmatprep.subr.mxu0 0.0
        %749 = vmatpush1.msra.mxu0 %v462
        %750 = vmatprep.subr.mxu0 0.0
        %751 = vmatpush1.msra.mxu0 %v461
        %752 = vmatprep.subr.mxu0 0.0
        %753 = vmatpush1.msra.mxu0 %v460
        %754 = vmatprep.subr.mxu0 0.0
        %755 = vmatpush1.msra.mxu0 %v459
        %756 = vmatprep.subr.mxu0 0.0
        %757 = vmatpush2.msra.mxu0 %v490
        %758 = vmatprep.subr.mxu0 0.0
        %759 = vmatpush2.msra.mxu0 %v489
        %760 = vmatprep.subr.mxu0 0.0
        %761 = vmatpush2.msra.mxu0 %v488
        %762 = vmatprep.subr.mxu0 0.0
        %763 = vmatpush2.msra.mxu0 %v487
        %764 = vmatprep.subr.mxu0 0.0
        %765 = vmatpush2.msra.mxu0 %v486
        %766 = vmatprep.subr.mxu0 0.0
        %767 = vmatpush2.msra.mxu0 %v485
        %768 = vmatprep.subr.mxu0 0.0
        %769 = vmatpush2.msra.mxu0 %v484
        %770 = vmatprep.subr.mxu0 0.0
        %771 = vmatpush2.msra.mxu0 %v483
        %772 = vmatprep.subr.mxu0 0.0
        %773 = vmatpush2.msra.mxu0 %v482
        %774 = vmatprep.subr.mxu0 0.0
        %775 = vmatpush2.msra.mxu0 %v481
        %776 = vmatprep.subr.mxu0 0.0
        %777 = vmatpush2.msra.mxu0 %v480
        %778 = vmatprep.subr.mxu0 0.0
        %779 = vmatpush2.msra.mxu0 %v479
        %780 = vmatprep.subr.mxu0 0.0
        %781 = vmatpush2.msra.mxu0 %v478
        %782 = vmatprep.subr.mxu0 0.0
        %783 = vmatpush2.msra.mxu0 %v477
        %784 = vmatprep.subr.mxu0 0.0
        %785 = vmatpush2.msra.mxu0 %v476
        %786 = vmatprep.subr.mxu0 0.0
        %787 = vmatpush2.msra.mxu0 %v475
        %788 = vmatprep.mubr.f32.mxu0 %v721
        %789 = vmatmul.mubr.f32.gmra.mxu0 %v714
        %v790 = vpop.f32.mrf.mxu0
        %v791 = vadd.f32 %v684, %v790
        %v792 = vpop.f32.mrf.mxu0
        %793 = vdwg.mxu0
        %v794 = vmax.f32 %v791, 0.0
        %s795 = sld [smem:[#allocation6 + $0x1]]
        %v796 = vstv %s795
        %vm797 = vcmask 523264
        %v799 = vsel %vm797, %v794, 0
        %801 = vmatprep.subr.mxu0 0.0
        %802 = vmatpush1.msra.mxu0 0.0
        %803 = vmatprep.subr.mxu0 0.0
        %804 = vmatpush1.msra.mxu0 0.0
        %805 = vmatprep.subr.mxu0 0.0
        %806 = vmatpush1.msra.mxu0 0.0
        %807 = vmatprep.subr.mxu0 0.0
        %808 = vmatpush1.msra.mxu0 0.0
        %809 = vmatprep.subr.mxu0 0.0
        %810 = vmatpush1.msra.mxu0 0.0
        %811 = vmatprep.subr.mxu0 0.0
        %812 = vmatpush1.msra.mxu0 0.0
        %813 = vmatprep.subr.mxu0 0.0
        %814 = vmatpush1.msra.mxu0 0.0
        %815 = vmatprep.subr.mxu0 0.0
        %816 = vmatpush1.msra.mxu0 0.0
        %817 = vmatprep.subr.mxu0 %v506
        %818 = vmatpush1.msra.mxu0 %v505
        %819 = vmatprep.subr.mxu0 %v504
        %820 = vmatpush1.msra.mxu0 %v503
        %821 = vmatprep.subr.mxu0 %v502
        %822 = vmatpush1.msra.mxu0 %v501
        %823 = vmatprep.subr.mxu0 %v500
        %824 = vmatpush1.msra.mxu0 %v499
        %825 = vmatprep.subr.mxu0 %v498
        %826 = vmatpush1.msra.mxu0 %v497
        %827 = vmatprep.subr.mxu0 %v496
        %828 = vmatpush1.msra.mxu0 %v495
        %829 = vmatprep.subr.mxu0 %v494
        %830 = vmatpush1.msra.mxu0 %v493
        %831 = vmatprep.subr.mxu0 %v492
        %832 = vmatpush1.msra.mxu0 %v491
        %833 = vmatprep.subr.mxu0 0.0
        %834 = vmatpush2.msra.mxu0 0.0
        %835 = vmatprep.subr.mxu0 0.0
        %836 = vmatpush2.msra.mxu0 0.0
        %837 = vmatprep.subr.mxu0 0.0
        %838 = vmatpush2.msra.mxu0 0.0
        %839 = vmatprep.subr.mxu0 0.0
        %840 = vmatpush2.msra.mxu0 0.0
        %841 = vmatprep.subr.mxu0 0.0
        %842 = vmatpush2.msra.mxu0 0.0
        %843 = vmatprep.subr.mxu0 0.0
        %844 = vmatpush2.msra.mxu0 0.0
        %845 = vmatprep.subr.mxu0 0.0
        %846 = vmatpush2.msra.mxu0 0.0
        %847 = vmatprep.subr.mxu0 0.0
        %848 = vmatpush2.msra.mxu0 0.0
        %849 = vmatprep.subr.mxu0 0.0
        %850 = vmatpush2.msra.mxu0 0.0
        %851 = vmatprep.subr.mxu0 0.0
        %852 = vmatpush2.msra.mxu0 0.0
        %853 = vmatprep.subr.mxu0 0.0
        %854 = vmatpush2.msra.mxu0 0.0
        %855 = vmatprep.subr.mxu0 0.0
        %856 = vmatpush2.msra.mxu0 0.0
        %857 = vmatprep.subr.mxu0 0.0
        %858 = vmatpush2.msra.mxu0 0.0
        %859 = vmatprep.subr.mxu0 0.0
        %860 = vmatpush2.msra.mxu0 0.0
        %861 = vmatprep.subr.mxu0 0.0
        %862 = vmatpush2.msra.mxu0 0.0
        %863 = vmatprep.subr.mxu0 0.0
        %864 = vmatpush2.msra.mxu0 0.0
        %865 = vmatprep.mubr.f32.mxu0 0.0
        %866 = vmatmul.mubr.f32.gmra.mxu0 %v799
        %v867 = vpop.f32.mrf.mxu0
        %v868 = vadd.f32 %v796, %v867
        %v869 = vpop.f32.mrf.mxu0
        %v870 = vadd.f32 %v796, %v869
        %871 = vdwg.mxu0
        %v872 = vmax.f32 %v868, 0.0
        %v873 = vmax.f32 %v870, 0.0
        %v874 = vadd.f32 %v395, %v396
        %875 = vadd.xlane.f32.xlu0 %v874
        %v876 = vpop.xlane.xlu0 %875
        %v877 = vadd.f32 %v397, %v398
        %878 = vadd.xlane.f32.xlu0 %v877
        %v879 = vpop.xlane.xlu0 %878
        %v880 = vadd.f32 %v399, %v400
        %881 = vadd.xlane.f32.xlu0 %v880
        %v882 = vpop.xlane.xlu0 %881
        %v883 = vadd.f32 %v401, %v402
        %884 = vadd.xlane.f32.xlu0 %v883
        %v885 = vpop.xlane.xlu0 %884
        %v886 = vadd.f32 %v403, %v404
        %887 = vadd.xlane.f32.xlu0 %v886
        %v888 = vpop.xlane.xlu0 %887
        %v889 = vadd.f32 %v405, %v406
        %890 = vadd.xlane.f32.xlu0 %v889
        %v891 = vpop.xlane.xlu0 %890
        %v892 = vadd.f32 %v407, %v408
        %893 = vadd.xlane.f32.xlu0 %v892
        %v894 = vpop.xlane.xlu0 %893
        %v895 = vadd.f32 %v409, %v410
        %896 = vadd.xlane.f32.xlu0 %v895
        %v897 = vpop.xlane.xlu0 %896
        %v898 = vadd.f32 %v411, %v412
        %899 = vadd.xlane.f32.xlu0 %v898
        %v900 = vpop.xlane.xlu0 %899
        %v901 = vadd.f32 %v413, %v414
        %902 = vadd.xlane.f32.xlu0 %v901
        %v903 = vpop.xlane.xlu0 %902
        %v904 = vadd.f32 %v415, %v416
        %905 = vadd.xlane.f32.xlu0 %v904
        %v906 = vpop.xlane.xlu0 %905
        %v907 = vadd.f32 %v417, %v418
        %908 = vadd.xlane.f32.xlu0 %v907
        %v909 = vpop.xlane.xlu0 %908
        %v910 = vadd.f32 %v419, %v420
        %911 = vadd.xlane.f32.xlu0 %v910
        %v912 = vpop.xlane.xlu0 %911
        %v913 = vadd.f32 %v421, %v422
        %914 = vadd.xlane.f32.xlu0 %v913
        %v915 = vpop.xlane.xlu0 %914
        %v916 = vadd.f32 %v423, %v424
        %917 = vadd.xlane.f32.xlu0 %v916
        %v918 = vpop.xlane.xlu0 %917
        %v919 = vadd.f32 %v425, %v426
        %920 = vadd.xlane.f32.xlu0 %v919
        %v921 = vpop.xlane.xlu0 %920
        %v922 = vadd.f32 %v427, %v428
        %923 = vadd.xlane.f32.xlu0 %v922
        %v924 = vpop.xlane.xlu0 %923
        %v925 = vadd.f32 %v429, %v430
        %926 = vadd.xlane.f32.xlu0 %v925
        %v927 = vpop.xlane.xlu0 %926
        %v928 = vadd.f32 %v431, %v432
        %929 = vadd.xlane.f32.xlu0 %v928
        %v930 = vpop.xlane.xlu0 %929
        %v931 = vadd.f32 %v433, %v434
        %932 = vadd.xlane.f32.xlu0 %v931
        %v933 = vpop.xlane.xlu0 %932
        %v934 = vadd.f32 %v435, %v436
        %935 = vadd.xlane.f32.xlu0 %v934
        %v936 = vpop.xlane.xlu0 %935
        %v937 = vadd.f32 %v437, %v438
        %938 = vadd.xlane.f32.xlu0 %v937
        %v939 = vpop.xlane.xlu0 %938
        %v940 = vadd.f32 %v439, %v440
        %941 = vadd.xlane.f32.xlu0 %v940
        %v942 = vpop.xlane.xlu0 %941
        %v943 = vadd.f32 %v441, %v442
        %944 = vadd.xlane.f32.xlu0 %v943
        %v945 = vpop.xlane.xlu0 %944
        %v946 = vadd.f32 %v443, %v444
        %947 = vadd.xlane.f32.xlu0 %v946
        %v948 = vpop.xlane.xlu0 %947
        %v949 = vadd.f32 %v445, %v446
        %950 = vadd.xlane.f32.xlu0 %v949
        %v951 = vpop.xlane.xlu0 %950
        %v952 = vadd.f32 %v447, %v448
        %953 = vadd.xlane.f32.xlu0 %v952
        %v954 = vpop.xlane.xlu0 %953
        %v955 = vadd.f32 %v449, %v450
        %956 = vadd.xlane.f32.xlu0 %v955
        %v957 = vpop.xlane.xlu0 %956
        %v958 = vadd.f32 %v451, %v452
        %959 = vadd.xlane.f32.xlu0 %v958
        %v960 = vpop.xlane.xlu0 %959
        %v961 = vadd.f32 %v453, %v454
        %962 = vadd.xlane.f32.xlu0 %v961
        %v963 = vpop.xlane.xlu0 %962
        %v964 = vadd.f32 %v455, %v456
        %965 = vadd.xlane.f32.xlu0 %v964
        %v966 = vpop.xlane.xlu0 %965
        %v967 = vadd.f32 %v457, %v458
        %968 = vadd.xlane.f32.xlu0 %v967
        %v969 = vpop.xlane.xlu0 %968
        %v970 = vrcp.pop 256.0
        %v971 = vmul.f32 %v876, %v970
        %v972 = vmul.f32 %v879, %v970
        %v973 = vmul.f32 %v882, %v970
        %v974 = vmul.f32 %v885, %v970
        %v975 = vmul.f32 %v888, %v970
        %v976 = vmul.f32 %v891, %v970
        %v977 = vmul.f32 %v894, %v970
        %v978 = vmul.f32 %v897, %v970
        %v979 = vmul.f32 %v900, %v970
        %v980 = vmul.f32 %v903, %v970
        %v981 = vmul.f32 %v906, %v970
        %v982 = vmul.f32 %v909, %v970
        %v983 = vmul.f32 %v912, %v970
        %v984 = vmul.f32 %v915, %v970
        %v985 = vmul.f32 %v918, %v970
        %v986 = vmul.f32 %v921, %v970
        %v987 = vmul.f32 %v924, %v970
        %v988 = vmul.f32 %v927, %v970
        %v989 = vmul.f32 %v930, %v970
        %v990 = vmul.f32 %v933, %v970
        %v991 = vmul.f32 %v936, %v970
        %v992 = vmul.f32 %v939, %v970
        %v993 = vmul.f32 %v942, %v970
        %v994 = vmul.f32 %v945, %v970
        %v995 = vmul.f32 %v948, %v970
        %v996 = vmul.f32 %v951, %v970
        %v997 = vmul.f32 %v954, %v970
        %v998 = vmul.f32 %v957, %v970
        %v999 = vmul.f32 %v960, %v970
        %v1000 = vmul.f32 %v963, %v970
        %v1001 = vmul.f32 %v966, %v970
        %v1002 = vmul.f32 %v969, %v970
        %v1003 = vmul.f32 %v971, %v507
        %v1004 = vmul.f32 %v972, %v508
        %v1005 = vmul.f32 %v973, %v509
        %v1006 = vmul.f32 %v974, %v510
        %v1007 = vmul.f32 %v975, %v507
        %v1008 = vmul.f32 %v976, %v508
        %v1009 = vmul.f32 %v977, %v509
        %v1010 = vmul.f32 %v978, %v510
        %v1011 = vmul.f32 %v979, %v507
        %v1012 = vmul.f32 %v980, %v508
        %v1013 = vmul.f32 %v981, %v509
        %v1014 = vmul.f32 %v982, %v510
        %v1015 = vmul.f32 %v983, %v507
        %v1016 = vmul.f32 %v984, %v508
        %v1017 = vmul.f32 %v985, %v509
        %v1018 = vmul.f32 %v986, %v510
        %v1019 = vmul.f32 %v987, %v507
        %v1020 = vmul.f32 %v988, %v508
        %v1021 = vmul.f32 %v989, %v509
        %v1022 = vmul.f32 %v990, %v510
        %v1023 = vmul.f32 %v991, %v507
        %v1024 = vmul.f32 %v992, %v508
        %v1025 = vmul.f32 %v993, %v509
        %v1026 = vmul.f32 %v994, %v510
        %v1027 = vmul.f32 %v995, %v507
        %v1028 = vmul.f32 %v996, %v508
        %v1029 = vmul.f32 %v997, %v509
        %v1030 = vmul.f32 %v998, %v510
        %v1031 = vmul.f32 %v999, %v507
        %v1032 = vmul.f32 %v1000, %v508
        %v1033 = vmul.f32 %v1001, %v509
        %v1034 = vmul.f32 %v1002, %v510
        %vm1035 = vcmask 15360
        %v1036 = vsel %vm1035, %v1003, 0.0
        %v1037 = vsel %vm1035, %v1004, 0.0
        %v1038 = vadd.f32 %v1036, %v1037
        %v1039 = vsel %vm1035, %v1005, 0.0
        %v1040 = vadd.f32 %v1038, %v1039
        %v1041 = vsel %vm1035, %v1006, 0.0
        %v1042 = vadd.f32 %v1040, %v1041
        %v1043 = vrot.slane %v1042, 4
        %v1044 = vadd.f32 %v1042, %v1043
        %v1045 = vrot.slane %v1044, 2
        %v1046 = vadd.f32 %v1044, %v1045
        %v1047 = vrot.slane %v1046, 1
        %v1048 = vadd.f32 %v1046, %v1047
        %v1049 = vsel %vm1035, %v1007, 0.0
        %v1050 = vsel %vm1035, %v1008, 0.0
        %v1051 = vadd.f32 %v1049, %v1050
        %v1052 = vsel %vm1035, %v1009, 0.0
        %v1053 = vadd.f32 %v1051, %v1052
        %v1054 = vsel %vm1035, %v1010, 0.0
        %v1055 = vadd.f32 %v1053, %v1054
        %v1056 = vrot.slane %v1055, 4
        %v1057 = vadd.f32 %v1055, %v1056
        %v1058 = vrot.slane %v1057, 2
        %v1059 = vadd.f32 %v1057, %v1058
        %v1060 = vrot.slane %v1059, 1
        %v1061 = vadd.f32 %v1059, %v1060
        %v1062 = vsel %vm1035, %v1011, 0.0
        %v1063 = vsel %vm1035, %v1012, 0.0
        %v1064 = vadd.f32 %v1062, %v1063
        %v1065 = vsel %vm1035, %v1013, 0.0
        %v1066 = vadd.f32 %v1064, %v1065
        %v1067 = vsel %vm1035, %v1014, 0.0
        %v1068 = vadd.f32 %v1066, %v1067
        %v1069 = vrot.slane %v1068, 4
        %v1070 = vadd.f32 %v1068, %v1069
        %v1071 = vrot.slane %v1070, 2
        %v1072 = vadd.f32 %v1070, %v1071
        %v1073 = vrot.slane %v1072, 1
        %v1074 = vadd.f32 %v1072, %v1073
        %v1075 = vsel %vm1035, %v1015, 0.0
        %v1076 = vsel %vm1035, %v1016, 0.0
        %v1077 = vadd.f32 %v1075, %v1076
        %v1078 = vsel %vm1035, %v1017, 0.0
        %v1079 = vadd.f32 %v1077, %v1078
        %v1080 = vsel %vm1035, %v1018, 0.0
        %v1081 = vadd.f32 %v1079, %v1080
        %v1082 = vrot.slane %v1081, 4
        %v1083 = vadd.f32 %v1081, %v1082
        %v1084 = vrot.slane %v1083, 2
        %v1085 = vadd.f32 %v1083, %v1084
        %v1086 = vrot.slane %v1085, 1
        %v1087 = vadd.f32 %v1085, %v1086
        %v1088 = vsel %vm1035, %v1019, 0.0
        %v1089 = vsel %vm1035, %v1020, 0.0
        %v1090 = vadd.f32 %v1088, %v1089
        %v1091 = vsel %vm1035, %v1021, 0.0
        %v1092 = vadd.f32 %v1090, %v1091
        %v1093 = vsel %vm1035, %v1022, 0.0
        %v1094 = vadd.f32 %v1092, %v1093
        %v1095 = vrot.slane %v1094, 4
        %v1096 = vadd.f32 %v1094, %v1095
        %v1097 = vrot.slane %v1096, 2
        %v1098 = vadd.f32 %v1096, %v1097
        %v1099 = vrot.slane %v1098, 1
        %v1100 = vadd.f32 %v1098, %v1099
        %v1101 = vsel %vm1035, %v1023, 0.0
        %v1102 = vsel %vm1035, %v1024, 0.0
        %v1103 = vadd.f32 %v1101, %v1102
        %v1104 = vsel %vm1035, %v1025, 0.0
        %v1105 = vadd.f32 %v1103, %v1104
        %v1106 = vsel %vm1035, %v1026, 0.0
        %v1107 = vadd.f32 %v1105, %v1106
        %v1108 = vrot.slane %v1107, 4
        %v1109 = vadd.f32 %v1107, %v1108
        %v1110 = vrot.slane %v1109, 2
        %v1111 = vadd.f32 %v1109, %v1110
        %v1112 = vrot.slane %v1111, 1
        %v1113 = vadd.f32 %v1111, %v1112
        %v1114 = vsel %vm1035, %v1027, 0.0
        %v1115 = vsel %vm1035, %v1028, 0.0
        %v1116 = vadd.f32 %v1114, %v1115
        %v1117 = vsel %vm1035, %v1029, 0.0
        %v1118 = vadd.f32 %v1116, %v1117
        %v1119 = vsel %vm1035, %v1030, 0.0
        %v1120 = vadd.f32 %v1118, %v1119
        %v1121 = vrot.slane %v1120, 4
        %v1122 = vadd.f32 %v1120, %v1121
        %v1123 = vrot.slane %v1122, 2
        %v1124 = vadd.f32 %v1122, %v1123
        %v1125 = vrot.slane %v1124, 1
        %v1126 = vadd.f32 %v1124, %v1125
        %v1127 = vsel %vm1035, %v1031, 0.0
        %v1128 = vsel %vm1035, %v1032, 0.0
        %v1129 = vadd.f32 %v1127, %v1128
        %v1130 = vsel %vm1035, %v1033, 0.0
        %v1131 = vadd.f32 %v1129, %v1130
        %v1132 = vsel %vm1035, %v1034, 0.0
        %v1133 = vadd.f32 %v1131, %v1132
        %v1134 = vrot.slane %v1133, 4
        %v1135 = vadd.f32 %v1133, %v1134
        %v1136 = vrot.slane %v1135, 2
        %v1137 = vadd.f32 %v1135, %v1136
        %v1138 = vrot.slane %v1137, 1
        %v1139 = vadd.f32 %v1137, %v1138
        %v1141 = vlaneseq
        %v1142 = vshrl.u32 %v1141, 7
        %v1143 = vsub.s32 0, %v1142
        %v1144 = vrot.slane %v511, %v1143
        %v1146 = vadd.f32 %v1048, %v1144
        %v1147 = vadd.f32 %v1061, %v1144
        %v1148 = vadd.f32 %v1074, %v1144
        %v1149 = vadd.f32 %v1087, %v1144
        %v1150 = vadd.f32 %v1100, %v1144
        %v1151 = vadd.f32 %v1113, %v1144
        %v1152 = vadd.f32 %v1126, %v1144
        %v1153 = vadd.f32 %v1139, %v1144
        %v1154 = vmax.f32 %v1146, 0.0
        %v1155 = vmax.f32 %v1147, 0.0
        %v1156 = vmax.f32 %v1148, 0.0
        %v1157 = vmax.f32 %v1149, 0.0
        %v1158 = vmax.f32 %v1150, 0.0
        %v1159 = vmax.f32 %v1151, 0.0
        %v1160 = vmax.f32 %v1152, 0.0
        %v1161 = vmax.f32 %v1153, 0.0
        %v1162 = vlaneseq
        %v1163 = vshrl.u32 %v1162, 7
        %v1164 = vsub.s32 0, %v1163
        %v1165 = vrot.slane %v1154, %v1164
        %1167 = vbcast.lane.b32.xlu0 %v1165, 256
        %v1168 = vpop.permute.xlu0 %1167
        %v1169 = vlaneseq
        %v1170 = vshrl.u32 %v1169, 7
        %v1171 = vsub.s32 0, %v1170
        %v1172 = vrot.slane %v1155, %v1171
        %1174 = vbcast.lane.b32.xlu0 %v1172, 256
        %v1175 = vpop.permute.xlu0 %1174
        %v1176 = vlaneseq
        %v1177 = vshrl.u32 %v1176, 7
        %v1178 = vsub.s32 0, %v1177
        %v1179 = vrot.slane %v1156, %v1178
        %1181 = vbcast.lane.b32.xlu0 %v1179, 256
        %v1182 = vpop.permute.xlu0 %1181
        %v1183 = vlaneseq
        %v1184 = vshrl.u32 %v1183, 7
        %v1185 = vsub.s32 0, %v1184
        %v1186 = vrot.slane %v1157, %v1185
        %1188 = vbcast.lane.b32.xlu0 %v1186, 256
        %v1189 = vpop.permute.xlu0 %1188
        %v1190 = vlaneseq
        %v1191 = vshrl.u32 %v1190, 7
        %v1192 = vsub.s32 0, %v1191
        %v1193 = vrot.slane %v1158, %v1192
        %1195 = vbcast.lane.b32.xlu0 %v1193, 256
        %v1196 = vpop.permute.xlu0 %1195
        %v1197 = vlaneseq
        %v1198 = vshrl.u32 %v1197, 7
        %v1199 = vsub.s32 0, %v1198
        %v1200 = vrot.slane %v1159, %v1199
        %1202 = vbcast.lane.b32.xlu0 %v1200, 256
        %v1203 = vpop.permute.xlu0 %1202
        %v1204 = vlaneseq
        %v1205 = vshrl.u32 %v1204, 7
        %v1206 = vsub.s32 0, %v1205
        %v1207 = vrot.slane %v1160, %v1206
        %1209 = vbcast.lane.b32.xlu0 %v1207, 256
        %v1210 = vpop.permute.xlu0 %1209
        %v1211 = vlaneseq
        %v1212 = vshrl.u32 %v1211, 7
        %v1213 = vsub.s32 0, %v1212
        %v1214 = vrot.slane %v1161, %v1213
        %1216 = vbcast.lane.b32.xlu0 %v1214, 256
        %v1217 = vpop.permute.xlu0 %1216
        %v1218 = vmul.f32 %v1168, %v512
        %v1219 = vmul.f32 %v1175, %v512
        %v1220 = vmul.f32 %v1182, %v512
        %v1221 = vmul.f32 %v1189, %v512
        %v1222 = vmul.f32 %v1196, %v512
        %v1223 = vmul.f32 %v1203, %v512
        %v1224 = vmul.f32 %v1210, %v512
        %v1225 = vmul.f32 %v1217, %v512
        %vm1226 = vcmask 254976
        %v1227 = vsel %vm1226, %v1218, 0.0
        %v1228 = vrot.slane %v1227, 4
        %v1229 = vadd.f32 %v1227, %v1228
        %v1230 = vrot.slane %v1229, 2
        %v1231 = vadd.f32 %v1229, %v1230
        %v1232 = vrot.slane %v1231, 1
        %v1233 = vadd.f32 %v1231, %v1232
        %v1234 = vsel %vm1226, %v1219, 0.0
        %v1235 = vrot.slane %v1234, 4
        %v1236 = vadd.f32 %v1234, %v1235
        %v1237 = vrot.slane %v1236, 2
        %v1238 = vadd.f32 %v1236, %v1237
        %v1239 = vrot.slane %v1238, 1
        %v1240 = vadd.f32 %v1238, %v1239
        %v1241 = vsel %vm1226, %v1220, 0.0
        %v1242 = vrot.slane %v1241, 4
        %v1243 = vadd.f32 %v1241, %v1242
        %v1244 = vrot.slane %v1243, 2
        %v1245 = vadd.f32 %v1243, %v1244
        %v1246 = vrot.slane %v1245, 1
        %v1247 = vadd.f32 %v1245, %v1246
        %v1248 = vsel %vm1226, %v1221, 0.0
        %v1249 = vrot.slane %v1248, 4
        %v1250 = vadd.f32 %v1248, %v1249
        %v1251 = vrot.slane %v1250, 2
        %v1252 = vadd.f32 %v1250, %v1251
        %v1253 = vrot.slane %v1252, 1
        %v1254 = vadd.f32 %v1252, %v1253
        %v1255 = vsel %vm1226, %v1222, 0.0
        %v1256 = vrot.slane %v1255, 4
        %v1257 = vadd.f32 %v1255, %v1256
        %v1258 = vrot.slane %v1257, 2
        %v1259 = vadd.f32 %v1257, %v1258
        %v1260 = vrot.slane %v1259, 1
        %v1261 = vadd.f32 %v1259, %v1260
        %v1262 = vsel %vm1226, %v1223, 0.0
        %v1263 = vrot.slane %v1262, 4
        %v1264 = vadd.f32 %v1262, %v1263
        %v1265 = vrot.slane %v1264, 2
        %v1266 = vadd.f32 %v1264, %v1265
        %v1267 = vrot.slane %v1266, 1
        %v1268 = vadd.f32 %v1266, %v1267
        %v1269 = vsel %vm1226, %v1224, 0.0
        %v1270 = vrot.slane %v1269, 4
        %v1271 = vadd.f32 %v1269, %v1270
        %v1272 = vrot.slane %v1271, 2
        %v1273 = vadd.f32 %v1271, %v1272
        %v1274 = vrot.slane %v1273, 1
        %v1275 = vadd.f32 %v1273, %v1274
        %v1276 = vsel %vm1226, %v1225, 0.0
        %v1277 = vrot.slane %v1276, 4
        %v1278 = vadd.f32 %v1276, %v1277
        %v1279 = vrot.slane %v1278, 2
        %v1280 = vadd.f32 %v1278, %v1279
        %v1281 = vrot.slane %v1280, 1
        %v1282 = vadd.f32 %v1280, %v1281
        %v1284 = vlaneseq
        %v1285 = vshrl.u32 %v1284, 7
        %v1286 = vsub.s32 0, %v1285
        %v1287 = vrot.slane %v513, %v1286
        %v1289 = vadd.f32 %v1233, %v1287
        %v1290 = vadd.f32 %v1240, %v1287
        %v1291 = vadd.f32 %v1247, %v1287
        %v1292 = vadd.f32 %v1254, %v1287
        %v1293 = vadd.f32 %v1261, %v1287
        %v1294 = vadd.f32 %v1268, %v1287
        %v1295 = vadd.f32 %v1275, %v1287
        %v1296 = vadd.f32 %v1282, %v1287
        %v1297 = vmax.f32 %v1289, 0.0
        %v1298 = vmax.f32 %v1290, 0.0
        %v1299 = vmax.f32 %v1291, 0.0
        %v1300 = vmax.f32 %v1292, 0.0
        %v1301 = vmax.f32 %v1293, 0.0
        %v1302 = vmax.f32 %v1294, 0.0
        %v1303 = vmax.f32 %v1295, 0.0
        %v1304 = vmax.f32 %v1296, 0.0
        %v1313 = vrot.slane %v1298, 7
        %v1314 = vsel %vm701, %v1313, %v1297
        %v1315 = vrot.slane %v1299, 6
        %v1316 = vsel %vm703, %v1315, %v1314
        %v1317 = vrot.slane %v1300, 5
        %v1318 = vsel %vm705, %v1317, %v1316
        %v1319 = vrot.slane %v1301, 4
        %v1320 = vsel %vm707, %v1319, %v1318
        %v1321 = vrot.slane %v1302, 3
        %v1322 = vsel %vm709, %v1321, %v1320
        %v1323 = vrot.slane %v1303, 2
        %v1324 = vsel %vm711, %v1323, %v1322
        %v1325 = vrot.slane %v1304, 1
        %v1326 = vsel %vm713, %v1325, %v1324
        %vm1327 = vcmask 261120
        %v1328 = vsel %vm1327, %v1326, 0
        %1330 = vmatprep.subr.mxu0 0.0
        %1331 = vmatpush1.msra.mxu0 0.0
        %1332 = vmatprep.subr.mxu0 0.0
        %1333 = vmatpush1.msra.mxu0 0.0
        %1334 = vmatprep.subr.mxu0 0.0
        %1335 = vmatpush1.msra.mxu0 0.0
        %1336 = vmatprep.subr.mxu0 0.0
        %1337 = vmatpush1.msra.mxu0 0.0
        %1338 = vmatprep.subr.mxu0 0.0
        %1339 = vmatpush1.msra.mxu0 0.0
        %1340 = vmatprep.subr.mxu0 0.0
        %1341 = vmatpush1.msra.mxu0 0.0
        %1342 = vmatprep.subr.mxu0 0.0
        %1343 = vmatpush1.msra.mxu0 0.0
        %1344 = vmatprep.subr.mxu0 0.0
        %1345 = vmatpush1.msra.mxu0 0.0
        %1346 = vmatprep.subr.mxu0 0.0
        %1347 = vmatpush1.msra.mxu0 0.0
        %1348 = vmatprep.subr.mxu0 0.0
        %1349 = vmatpush1.msra.mxu0 0.0
        %1350 = vmatprep.subr.mxu0 0.0
        %1351 = vmatpush1.msra.mxu0 0.0
        %1352 = vmatprep.subr.mxu0 0.0
        %1353 = vmatpush1.msra.mxu0 0.0
        %1354 = vmatprep.subr.mxu0 0.0
        %1355 = vmatpush1.msra.mxu0 %v517
        %1356 = vmatprep.subr.mxu0 0.0
        %1357 = vmatpush1.msra.mxu0 %v516
        %1358 = vmatprep.subr.mxu0 0.0
        %1359 = vmatpush1.msra.mxu0 %v515
        %1360 = vmatprep.subr.mxu0 0.0
        %1361 = vmatpush1.msra.mxu0 %v514
        %1362 = vmatprep.subr.mxu0 0.0
        %1363 = vmatpush2.msra.mxu0 0.0
        %1364 = vmatprep.subr.mxu0 0.0
        %1365 = vmatpush2.msra.mxu0 0.0
        %1366 = vmatprep.subr.mxu0 0.0
        %1367 = vmatpush2.msra.mxu0 0.0
        %1368 = vmatprep.subr.mxu0 0.0
        %1369 = vmatpush2.msra.mxu0 0.0
        %1370 = vmatprep.subr.mxu0 0.0
        %1371 = vmatpush2.msra.mxu0 0.0
        %1372 = vmatprep.subr.mxu0 0.0
        %1373 = vmatpush2.msra.mxu0 0.0
        %1374 = vmatprep.subr.mxu0 0.0
        %1375 = vmatpush2.msra.mxu0 0.0
        %1376 = vmatprep.subr.mxu0 0.0
        %1377 = vmatpush2.msra.mxu0 0.0
        %1378 = vmatprep.subr.mxu0 0.0
        %1379 = vmatpush2.msra.mxu0 0.0
        %1380 = vmatprep.subr.mxu0 0.0
        %1381 = vmatpush2.msra.mxu0 0.0
        %1382 = vmatprep.subr.mxu0 0.0
        %1383 = vmatpush2.msra.mxu0 0.0
        %1384 = vmatprep.subr.mxu0 0.0
        %1385 = vmatpush2.msra.mxu0 0.0
        %1386 = vmatprep.subr.mxu0 0.0
        %1387 = vmatpush2.msra.mxu0 0.0
        %1388 = vmatprep.subr.mxu0 0.0
        %1389 = vmatpush2.msra.mxu0 0.0
        %1390 = vmatprep.subr.mxu0 0.0
        %1391 = vmatpush2.msra.mxu0 0.0
        %1392 = vmatprep.subr.mxu0 0.0
        %1393 = vmatpush2.msra.mxu0 0.0
        %1394 = vmatprep.mubr.f32.mxu0 0.0
        %1395 = vmatmul.mubr.f32.gmra.mxu0 %v1328
        %v1396 = vpop.f32.mrf.mxu0
        %v1397 = vadd.f32 0.0, %v1396
        %v1398 = vpop.f32.mrf.mxu0
        %1399 = vdwg.mxu0
        %v1400 = vlaneseq
        %v1401 = vshrl.u32 %v1400, 7
        %v1402 = vsub.s32 0, %v1401
        %v1403 = vrot.slane %v1397, %v1402
        %1405 = vbcast.lane.b32.xlu0 %v1403, 256
        %v1406 = vpop.permute.xlu0 %1405
        %s1408 = sor.u32 256, 8
        %1409 = vbcast.lane.b32.xlu0 %v1403, %s1408
        %v1410 = vpop.permute.xlu0 %1409
        %s1412 = sor.u32 256, 16
        %1413 = vbcast.lane.b32.xlu0 %v1403, %s1412
        %v1414 = vpop.permute.xlu0 %1413
        %s1416 = sor.u32 256, 24
        %1417 = vbcast.lane.b32.xlu0 %v1403, %s1416
        %v1418 = vpop.permute.xlu0 %1417
        %v1419 = vlaneseq
        %v1420 = vshrl.u32 %v1419, 7
        %v1421 = vsub.s32 1, %v1420
        %v1422 = vrot.slane %v1397, %v1421
        %1424 = vbcast.lane.b32.xlu0 %v1422, 256
        %v1425 = vpop.permute.xlu0 %1424
        %s1427 = sor.u32 256, 8
        %1428 = vbcast.lane.b32.xlu0 %v1422, %s1427
        %v1429 = vpop.permute.xlu0 %1428
        %s1431 = sor.u32 256, 16
        %1432 = vbcast.lane.b32.xlu0 %v1422, %s1431
        %v1433 = vpop.permute.xlu0 %1432
        %s1435 = sor.u32 256, 24
        %1436 = vbcast.lane.b32.xlu0 %v1422, %s1435
        %v1437 = vpop.permute.xlu0 %1436
        %v1438 = vlaneseq
        %v1439 = vshrl.u32 %v1438, 7
        %v1440 = vsub.s32 2, %v1439
        %v1441 = vrot.slane %v1397, %v1440
        %1443 = vbcast.lane.b32.xlu0 %v1441, 256
        %v1444 = vpop.permute.xlu0 %1443
        %s1446 = sor.u32 256, 8
        %1447 = vbcast.lane.b32.xlu0 %v1441, %s1446
        %v1448 = vpop.permute.xlu0 %1447
        %s1450 = sor.u32 256, 16
        %1451 = vbcast.lane.b32.xlu0 %v1441, %s1450
        %v1452 = vpop.permute.xlu0 %1451
        %s1454 = sor.u32 256, 24
        %1455 = vbcast.lane.b32.xlu0 %v1441, %s1454
        %v1456 = vpop.permute.xlu0 %1455
        %v1457 = vlaneseq
        %v1458 = vshrl.u32 %v1457, 7
        %v1459 = vsub.s32 3, %v1458
        %v1460 = vrot.slane %v1397, %v1459
        %1462 = vbcast.lane.b32.xlu0 %v1460, 256
        %v1463 = vpop.permute.xlu0 %1462
        %s1465 = sor.u32 256, 8
        %1466 = vbcast.lane.b32.xlu0 %v1460, %s1465
        %v1467 = vpop.permute.xlu0 %1466
        %s1469 = sor.u32 256, 16
        %1470 = vbcast.lane.b32.xlu0 %v1460, %s1469
        %v1471 = vpop.permute.xlu0 %1470
        %s1473 = sor.u32 256, 24
        %1474 = vbcast.lane.b32.xlu0 %v1460, %s1473
        %v1475 = vpop.permute.xlu0 %1474
        %v1476 = vlaneseq
        %v1477 = vshrl.u32 %v1476, 7
        %v1478 = vsub.s32 4, %v1477
        %v1479 = vrot.slane %v1397, %v1478
        %1481 = vbcast.lane.b32.xlu0 %v1479, 256
        %v1482 = vpop.permute.xlu0 %1481
        %s1484 = sor.u32 256, 8
        %1485 = vbcast.lane.b32.xlu0 %v1479, %s1484
        %v1486 = vpop.permute.xlu0 %1485
        %s1488 = sor.u32 256, 16
        %1489 = vbcast.lane.b32.xlu0 %v1479, %s1488
        %v1490 = vpop.permute.xlu0 %1489
        %s1492 = sor.u32 256, 24
        %1493 = vbcast.lane.b32.xlu0 %v1479, %s1492
        %v1494 = vpop.permute.xlu0 %1493
        %v1495 = vlaneseq
        %v1496 = vshrl.u32 %v1495, 7
        %v1497 = vsub.s32 5, %v1496
        %v1498 = vrot.slane %v1397, %v1497
        %1500 = vbcast.lane.b32.xlu0 %v1498, 256
        %v1501 = vpop.permute.xlu0 %1500
        %s1503 = sor.u32 256, 8
        %1504 = vbcast.lane.b32.xlu0 %v1498, %s1503
        %v1505 = vpop.permute.xlu0 %1504
        %s1507 = sor.u32 256, 16
        %1508 = vbcast.lane.b32.xlu0 %v1498, %s1507
        %v1509 = vpop.permute.xlu0 %1508
        %s1511 = sor.u32 256, 24
        %1512 = vbcast.lane.b32.xlu0 %v1498, %s1511
        %v1513 = vpop.permute.xlu0 %1512
        %v1514 = vlaneseq
        %v1515 = vshrl.u32 %v1514, 7
        %v1516 = vsub.s32 6, %v1515
        %v1517 = vrot.slane %v1397, %v1516
        %1519 = vbcast.lane.b32.xlu0 %v1517, 256
        %v1520 = vpop.permute.xlu0 %1519
        %s1522 = sor.u32 256, 8
        %1523 = vbcast.lane.b32.xlu0 %v1517, %s1522
        %v1524 = vpop.permute.xlu0 %1523
        %s1526 = sor.u32 256, 16
        %1527 = vbcast.lane.b32.xlu0 %v1517, %s1526
        %v1528 = vpop.permute.xlu0 %1527
        %s1530 = sor.u32 256, 24
        %1531 = vbcast.lane.b32.xlu0 %v1517, %s1530
        %v1532 = vpop.permute.xlu0 %1531
        %v1533 = vlaneseq
        %v1534 = vshrl.u32 %v1533, 7
        %v1535 = vsub.s32 7, %v1534
        %v1536 = vrot.slane %v1397, %v1535
        %1538 = vbcast.lane.b32.xlu0 %v1536, 256
        %v1539 = vpop.permute.xlu0 %1538
        %s1541 = sor.u32 256, 8
        %1542 = vbcast.lane.b32.xlu0 %v1536, %s1541
        %v1543 = vpop.permute.xlu0 %1542
        %s1545 = sor.u32 256, 16
        %1546 = vbcast.lane.b32.xlu0 %v1536, %s1545
        %v1547 = vpop.permute.xlu0 %1546
        %s1549 = sor.u32 256, 24
        %1550 = vbcast.lane.b32.xlu0 %v1536, %s1549
        %v1551 = vpop.permute.xlu0 %1550
        %v1554 = vcombine.low %v872, %v873
        %v1555 = vcombine.high %v872, %v873
        %v1557 = vunpack.c.l.s4 1966171168
        %v1558 = vunpack.c.0.s8 %v1557
        %v1559 = vlaneseq
        %v1560 = vshrl.u32 %v1559, 7
        %v1561 = vsub.s32 %v1558, %v1560
        %v1562 = vrot.slane %v1554, %v1561
        %v1564 = vunpack.c.l.s4 1966171168
        %v1565 = vunpack.c.0.s8 %v1564
        %v1566 = vlaneseq
        %v1567 = vshrl.u32 %v1566, 7
        %v1568 = vsub.s32 %v1565, %v1567
        %v1569 = vrot.slane %v1555, %v1568
        %v1570 = vcombine.high %v1562, %v1562
        %v1571 = vcombine.high %v1569, %v1569
        %v1573 = vunpack.c.l.s4 1966171168
        %v1574 = vunpack.c.0.s8 %v1573
        %v1575 = vlaneseq
        %v1576 = vshrl.u32 %v1575, 7
        %v1577 = vsub.s32 %v1574, %v1576
        %v1578 = vrot.slane %v1562, %v1577
        %v1580 = vunpack.c.l.s4 1966171168
        %v1581 = vunpack.c.0.s8 %v1580
        %v1582 = vlaneseq
        %v1583 = vshrl.u32 %v1582, 7
        %v1584 = vsub.s32 %v1581, %v1583
        %v1585 = vrot.slane %v1569, %v1584
        %v1587 = vunpack.c.l.s4 1966171168
        %v1588 = vunpack.c.0.s8 %v1587
        %v1589 = vlaneseq
        %v1590 = vshrl.u32 %v1589, 7
        %v1591 = vsub.s32 %v1588, %v1590
        %v1592 = vrot.slane %v1570, %v1591
        %v1594 = vunpack.c.l.s4 1966171168
        %v1595 = vunpack.c.0.s8 %v1594
        %v1596 = vlaneseq
        %v1597 = vshrl.u32 %v1596, 7
        %v1598 = vsub.s32 %v1595, %v1597
        %v1599 = vrot.slane %v1571, %v1598
        %v1600 = vcombine.high %v1578, %v1578
        %v1601 = vcombine.high %v1585, %v1585
        %v1602 = vcombine.high %v1592, %v1592
        %v1603 = vcombine.high %v1599, %v1599
        %v1604 = vlaneseq
        %v1605 = vshrl.u32 %v1604, 7
        %v1606 = vsub.s32 0, %v1605
        %v1607 = vrot.slane %v1578, %v1606
        %v1608 = vlaneseq
        %v1609 = vshrl.u32 %v1608, 7
        %v1610 = vsub.s32 1, %v1609
        %v1611 = vrot.slane %v1578, %v1610
        %v1612 = vlaneseq
        %v1613 = vshrl.u32 %v1612, 7
        %v1614 = vsub.s32 0, %v1613
        %v1615 = vrot.slane %v1592, %v1614
        %v1616 = vlaneseq
        %v1617 = vshrl.u32 %v1616, 7
        %v1618 = vsub.s32 1, %v1617
        %v1619 = vrot.slane %v1592, %v1618
        %v1620 = vlaneseq
        %v1621 = vshrl.u32 %v1620, 7
        %v1622 = vsub.s32 0, %v1621
        %v1623 = vrot.slane %v1600, %v1622
        %v1624 = vlaneseq
        %v1625 = vshrl.u32 %v1624, 7
        %v1626 = vsub.s32 1, %v1625
        %v1627 = vrot.slane %v1600, %v1626
        %v1628 = vlaneseq
        %v1629 = vshrl.u32 %v1628, 7
        %v1630 = vsub.s32 0, %v1629
        %v1631 = vrot.slane %v1602, %v1630
        %v1632 = vlaneseq
        %v1633 = vshrl.u32 %v1632, 7
        %v1634 = vsub.s32 1, %v1633
        %v1635 = vrot.slane %v1602, %v1634
        %v1636 = vlaneseq
        %v1637 = vshrl.u32 %v1636, 7
        %v1638 = vsub.s32 0, %v1637
        %v1639 = vrot.slane %v1585, %v1638
        %v1640 = vlaneseq
        %v1641 = vshrl.u32 %v1640, 7
        %v1642 = vsub.s32 1, %v1641
        %v1643 = vrot.slane %v1585, %v1642
        %v1644 = vlaneseq
        %v1645 = vshrl.u32 %v1644, 7
        %v1646 = vsub.s32 0, %v1645
        %v1647 = vrot.slane %v1599, %v1646
        %v1648 = vlaneseq
        %v1649 = vshrl.u32 %v1648, 7
        %v1650 = vsub.s32 1, %v1649
        %v1651 = vrot.slane %v1599, %v1650
        %v1652 = vlaneseq
        %v1653 = vshrl.u32 %v1652, 7
        %v1654 = vsub.s32 0, %v1653
        %v1655 = vrot.slane %v1601, %v1654
        %v1656 = vlaneseq
        %v1657 = vshrl.u32 %v1656, 7
        %v1658 = vsub.s32 1, %v1657
        %v1659 = vrot.slane %v1601, %v1658
        %v1660 = vlaneseq
        %v1661 = vshrl.u32 %v1660, 7
        %v1662 = vsub.s32 0, %v1661
        %v1663 = vrot.slane %v1603, %v1662
        %v1664 = vlaneseq
        %v1665 = vshrl.u32 %v1664, 7
        %v1666 = vsub.s32 1, %v1665
        %v1667 = vrot.slane %v1603, %v1666
        %v1684 = vmul.f32 %v1406, %v1607
        %v1685 = vmul.f32 %v1406, %v1611
        %v1686 = vmul.f32 %v1410, %v1607
        %v1687 = vmul.f32 %v1410, %v1611
        %v1688 = vmul.f32 %v1414, %v1607
        %v1689 = vmul.f32 %v1414, %v1611
        %v1690 = vmul.f32 %v1418, %v1607
        %v1691 = vmul.f32 %v1418, %v1611
        %v1692 = vmul.f32 %v1425, %v1615
        %v1693 = vmul.f32 %v1425, %v1619
        %v1694 = vmul.f32 %v1429, %v1615
        %v1695 = vmul.f32 %v1429, %v1619
        %v1696 = vmul.f32 %v1433, %v1615
        %v1697 = vmul.f32 %v1433, %v1619
        %v1698 = vmul.f32 %v1437, %v1615
        %v1699 = vmul.f32 %v1437, %v1619
        %v1700 = vmul.f32 %v1444, %v1623
        %v1701 = vmul.f32 %v1444, %v1627
        %v1702 = vmul.f32 %v1448, %v1623
        %v1703 = vmul.f32 %v1448, %v1627
        %v1704 = vmul.f32 %v1452, %v1623
        %v1705 = vmul.f32 %v1452, %v1627
        %v1706 = vmul.f32 %v1456, %v1623
        %v1707 = vmul.f32 %v1456, %v1627
        %v1708 = vmul.f32 %v1463, %v1631
        %v1709 = vmul.f32 %v1463, %v1635
        %v1710 = vmul.f32 %v1467, %v1631
        %v1711 = vmul.f32 %v1467, %v1635
        %v1712 = vmul.f32 %v1471, %v1631
        %v1713 = vmul.f32 %v1471, %v1635
        %v1714 = vmul.f32 %v1475, %v1631
        %v1715 = vmul.f32 %v1475, %v1635
        %v1716 = vmul.f32 %v1482, %v1639
        %v1717 = vmul.f32 %v1482, %v1643
        %v1718 = vmul.f32 %v1486, %v1639
        %v1719 = vmul.f32 %v1486, %v1643
        %v1720 = vmul.f32 %v1490, %v1639
        %v1721 = vmul.f32 %v1490, %v1643
        %v1722 = vmul.f32 %v1494, %v1639
        %v1723 = vmul.f32 %v1494, %v1643
        %v1724 = vmul.f32 %v1501, %v1647
        %v1725 = vmul.f32 %v1501, %v1651
        %v1726 = vmul.f32 %v1505, %v1647
        %v1727 = vmul.f32 %v1505, %v1651
        %v1728 = vmul.f32 %v1509, %v1647
        %v1729 = vmul.f32 %v1509, %v1651
        %v1730 = vmul.f32 %v1513, %v1647
        %v1731 = vmul.f32 %v1513, %v1651
        %v1732 = vmul.f32 %v1520, %v1655
        %v1733 = vmul.f32 %v1520, %v1659
        %v1734 = vmul.f32 %v1524, %v1655
        %v1735 = vmul.f32 %v1524, %v1659
        %v1736 = vmul.f32 %v1528, %v1655
        %v1737 = vmul.f32 %v1528, %v1659
        %v1738 = vmul.f32 %v1532, %v1655
        %v1739 = vmul.f32 %v1532, %v1659
        %v1740 = vmul.f32 %v1539, %v1663
        %v1741 = vmul.f32 %v1539, %v1667
        %v1742 = vmul.f32 %v1543, %v1663
        %v1743 = vmul.f32 %v1543, %v1667
        %v1744 = vmul.f32 %v1547, %v1663
        %v1745 = vmul.f32 %v1547, %v1667
        %v1746 = vmul.f32 %v1551, %v1663
        %v1747 = vmul.f32 %v1551, %v1667
        %1749 = vset.pattern.permute.xlu0 0
        %1750 = vperm.xlu0 %1749, %v518
        %v1751 = vpop.permute.xlu0 %1750
        %1754 = vset.pattern.permute.xlu0 0
        %1755 = vperm.xlu0 %1754, %v519
        %v1756 = vpop.permute.xlu0 %1755
        %1759 = vset.pattern.permute.xlu0 0
        %1760 = vperm.xlu0 %1759, %v520
        %v1761 = vpop.permute.xlu0 %1760
        %1764 = vset.pattern.permute.xlu0 0
        %1765 = vperm.xlu0 %1764, %v521
        %v1766 = vpop.permute.xlu0 %1765
        %v1768 = vadd.f32 %v1684, %v1751
        %v1769 = vadd.f32 %v1685, %v1751
        %v1770 = vadd.f32 %v1686, %v1756
        %v1771 = vadd.f32 %v1687, %v1756
        %v1772 = vadd.f32 %v1688, %v1761
        %v1773 = vadd.f32 %v1689, %v1761
        %v1774 = vadd.f32 %v1690, %v1766
        %v1775 = vadd.f32 %v1691, %v1766
        %v1776 = vadd.f32 %v1692, %v1751
        %v1777 = vadd.f32 %v1693, %v1751
        %v1778 = vadd.f32 %v1694, %v1756
        %v1779 = vadd.f32 %v1695, %v1756
        %v1780 = vadd.f32 %v1696, %v1761
        %v1781 = vadd.f32 %v1697, %v1761
        %v1782 = vadd.f32 %v1698, %v1766
        %v1783 = vadd.f32 %v1699, %v1766
        %v1784 = vadd.f32 %v1700, %v1751
        %v1785 = vadd.f32 %v1701, %v1751
        %v1786 = vadd.f32 %v1702, %v1756
        %v1787 = vadd.f32 %v1703, %v1756
        %v1788 = vadd.f32 %v1704, %v1761
        %v1789 = vadd.f32 %v1705, %v1761
        %v1790 = vadd.f32 %v1706, %v1766
        %v1791 = vadd.f32 %v1707, %v1766
        %v1792 = vadd.f32 %v1708, %v1751
        %v1793 = vadd.f32 %v1709, %v1751
        %v1794 = vadd.f32 %v1710, %v1756
        %v1795 = vadd.f32 %v1711, %v1756
        %v1796 = vadd.f32 %v1712, %v1761
        %v1797 = vadd.f32 %v1713, %v1761
        %v1798 = vadd.f32 %v1714, %v1766
        %v1799 = vadd.f32 %v1715, %v1766
        %v1800 = vadd.f32 %v1716, %v1751
        %v1801 = vadd.f32 %v1717, %v1751
        %v1802 = vadd.f32 %v1718, %v1756
        %v1803 = vadd.f32 %v1719, %v1756
        %v1804 = vadd.f32 %v1720, %v1761
        %v1805 = vadd.f32 %v1721, %v1761
        %v1806 = vadd.f32 %v1722, %v1766
        %v1807 = vadd.f32 %v1723, %v1766
        %v1808 = vadd.f32 %v1724, %v1751
        %v1809 = vadd.f32 %v1725, %v1751
        %v1810 = vadd.f32 %v1726, %v1756
        %v1811 = vadd.f32 %v1727, %v1756
        %v1812 = vadd.f32 %v1728, %v1761
        %v1813 = vadd.f32 %v1729, %v1761
        %v1814 = vadd.f32 %v1730, %v1766
        %v1815 = vadd.f32 %v1731, %v1766
        %v1816 = vadd.f32 %v1732, %v1751
        %v1817 = vadd.f32 %v1733, %v1751
        %v1818 = vadd.f32 %v1734, %v1756
        %v1819 = vadd.f32 %v1735, %v1756
        %v1820 = vadd.f32 %v1736, %v1761
        %v1821 = vadd.f32 %v1737, %v1761
        %v1822 = vadd.f32 %v1738, %v1766
        %v1823 = vadd.f32 %v1739, %v1766
        %v1824 = vadd.f32 %v1740, %v1751
        %v1825 = vadd.f32 %v1741, %v1751
        %v1826 = vadd.f32 %v1742, %v1756
        %v1827 = vadd.f32 %v1743, %v1756
        %v1828 = vadd.f32 %v1744, %v1761
        %v1829 = vadd.f32 %v1745, %v1761
        %v1830 = vadd.f32 %v1746, %v1766
        %v1831 = vadd.f32 %v1747, %v1766
        %v1832 = vmax.f32 %v1768, 0.0
        %v1833 = vmax.f32 %v1769, 0.0
        %v1834 = vmax.f32 %v1770, 0.0
        %v1835 = vmax.f32 %v1771, 0.0
        %v1836 = vmax.f32 %v1772, 0.0
        %v1837 = vmax.f32 %v1773, 0.0
        %v1838 = vmax.f32 %v1774, 0.0
        %v1839 = vmax.f32 %v1775, 0.0
        %v1840 = vmax.f32 %v1776, 0.0
        %v1841 = vmax.f32 %v1777, 0.0
        %v1842 = vmax.f32 %v1778, 0.0
        %v1843 = vmax.f32 %v1779, 0.0
        %v1844 = vmax.f32 %v1780, 0.0
        %v1845 = vmax.f32 %v1781, 0.0
        %v1846 = vmax.f32 %v1782, 0.0
        %v1847 = vmax.f32 %v1783, 0.0
        %v1848 = vmax.f32 %v1784, 0.0
        %v1849 = vmax.f32 %v1785, 0.0
        %v1850 = vmax.f32 %v1786, 0.0
        %v1851 = vmax.f32 %v1787, 0.0
        %v1852 = vmax.f32 %v1788, 0.0
        %v1853 = vmax.f32 %v1789, 0.0
        %v1854 = vmax.f32 %v1790, 0.0
        %v1855 = vmax.f32 %v1791, 0.0
        %v1856 = vmax.f32 %v1792, 0.0
        %v1857 = vmax.f32 %v1793, 0.0
        %v1858 = vmax.f32 %v1794, 0.0
        %v1859 = vmax.f32 %v1795, 0.0
        %v1860 = vmax.f32 %v1796, 0.0
        %v1861 = vmax.f32 %v1797, 0.0
        %v1862 = vmax.f32 %v1798, 0.0
        %v1863 = vmax.f32 %v1799, 0.0
        %v1864 = vmax.f32 %v1800, 0.0
        %v1865 = vmax.f32 %v1801, 0.0
        %v1866 = vmax.f32 %v1802, 0.0
        %v1867 = vmax.f32 %v1803, 0.0
        %v1868 = vmax.f32 %v1804, 0.0
        %v1869 = vmax.f32 %v1805, 0.0
        %v1870 = vmax.f32 %v1806, 0.0
        %v1871 = vmax.f32 %v1807, 0.0
        %v1872 = vmax.f32 %v1808, 0.0
        %v1873 = vmax.f32 %v1809, 0.0
        %v1874 = vmax.f32 %v1810, 0.0
        %v1875 = vmax.f32 %v1811, 0.0
        %v1876 = vmax.f32 %v1812, 0.0
        %v1877 = vmax.f32 %v1813, 0.0
        %v1878 = vmax.f32 %v1814, 0.0
        %v1879 = vmax.f32 %v1815, 0.0
        %v1880 = vmax.f32 %v1816, 0.0
        %v1881 = vmax.f32 %v1817, 0.0
        %v1882 = vmax.f32 %v1818, 0.0
        %v1883 = vmax.f32 %v1819, 0.0
        %v1884 = vmax.f32 %v1820, 0.0
        %v1885 = vmax.f32 %v1821, 0.0
        %v1886 = vmax.f32 %v1822, 0.0
        %v1887 = vmax.f32 %v1823, 0.0
        %v1888 = vmax.f32 %v1824, 0.0
        %v1889 = vmax.f32 %v1825, 0.0
        %v1890 = vmax.f32 %v1826, 0.0
        %v1891 = vmax.f32 %v1827, 0.0
        %v1892 = vmax.f32 %v1828, 0.0
        %v1893 = vmax.f32 %v1829, 0.0
        %v1894 = vmax.f32 %v1830, 0.0
        %v1895 = vmax.f32 %v1831, 0.0
        %v1896 = vsub.f32 0.0, %v1832
        %v1897 = vsub.f32 0.0, %v1833
        %v1898 = vsub.f32 0.0, %v1834
        %v1899 = vsub.f32 0.0, %v1835
        %v1900 = vsub.f32 0.0, %v1836
        %v1901 = vsub.f32 0.0, %v1837
        %v1902 = vsub.f32 0.0, %v1838
        %v1903 = vsub.f32 0.0, %v1839
        %v1904 = vsub.f32 0.0, %v1840
        %v1905 = vsub.f32 0.0, %v1841
        %v1906 = vsub.f32 0.0, %v1842
        %v1907 = vsub.f32 0.0, %v1843
        %v1908 = vsub.f32 0.0, %v1844
        %v1909 = vsub.f32 0.0, %v1845
        %v1910 = vsub.f32 0.0, %v1846
        %v1911 = vsub.f32 0.0, %v1847
        %v1912 = vsub.f32 0.0, %v1848
        %v1913 = vsub.f32 0.0, %v1849
        %v1914 = vsub.f32 0.0, %v1850
        %v1915 = vsub.f32 0.0, %v1851
        %v1916 = vsub.f32 0.0, %v1852
        %v1917 = vsub.f32 0.0, %v1853
        %v1918 = vsub.f32 0.0, %v1854
        %v1919 = vsub.f32 0.0, %v1855
        %v1920 = vsub.f32 0.0, %v1856
        %v1921 = vsub.f32 0.0, %v1857
        %v1922 = vsub.f32 0.0, %v1858
        %v1923 = vsub.f32 0.0, %v1859
        %v1924 = vsub.f32 0.0, %v1860
        %v1925 = vsub.f32 0.0, %v1861
        %v1926 = vsub.f32 0.0, %v1862
        %v1927 = vsub.f32 0.0, %v1863
        %v1928 = vsub.f32 0.0, %v1864
        %v1929 = vsub.f32 0.0, %v1865
        %v1930 = vsub.f32 0.0, %v1866
        %v1931 = vsub.f32 0.0, %v1867
        %v1932 = vsub.f32 0.0, %v1868
        %v1933 = vsub.f32 0.0, %v1869
        %v1934 = vsub.f32 0.0, %v1870
        %v1935 = vsub.f32 0.0, %v1871
        %v1936 = vsub.f32 0.0, %v1872
        %v1937 = vsub.f32 0.0, %v1873
        %v1938 = vsub.f32 0.0, %v1874
        %v1939 = vsub.f32 0.0, %v1875
        %v1940 = vsub.f32 0.0, %v1876
        %v1941 = vsub.f32 0.0, %v1877
        %v1942 = vsub.f32 0.0, %v1878
        %v1943 = vsub.f32 0.0, %v1879
        %v1944 = vsub.f32 0.0, %v1880
        %v1945 = vsub.f32 0.0, %v1881
        %v1946 = vsub.f32 0.0, %v1882
        %v1947 = vsub.f32 0.0, %v1883
        %v1948 = vsub.f32 0.0, %v1884
        %v1949 = vsub.f32 0.0, %v1885
        %v1950 = vsub.f32 0.0, %v1886
        %v1951 = vsub.f32 0.0, %v1887
        %v1952 = vsub.f32 0.0, %v1888
        %v1953 = vsub.f32 0.0, %v1889
        %v1954 = vsub.f32 0.0, %v1890
        %v1955 = vsub.f32 0.0, %v1891
        %v1956 = vsub.f32 0.0, %v1892
        %v1957 = vsub.f32 0.0, %v1893
        %v1958 = vsub.f32 0.0, %v1894
        %v1959 = vsub.f32 0.0, %v1895
        %v1960 = vmul.f32 %v1896, 1.442695
        %v1961 = vpow.pop %v1960
        %v1962 = vmul.f32 %v1897, 1.442695
        %v1963 = vpow.pop %v1962
        %v1964 = vmul.f32 %v1898, 1.442695
        %v1965 = vpow.pop %v1964
        %v1966 = vmul.f32 %v1899, 1.442695
        %v1967 = vpow.pop %v1966
        %v1968 = vmul.f32 %v1900, 1.442695
        %v1969 = vpow.pop %v1968
        %v1970 = vmul.f32 %v1901, 1.442695
        %v1971 = vpow.pop %v1970
        %v1972 = vmul.f32 %v1902, 1.442695
        %v1973 = vpow.pop %v1972
        %v1974 = vmul.f32 %v1903, 1.442695
        %v1975 = vpow.pop %v1974
        %v1976 = vmul.f32 %v1904, 1.442695
        %v1977 = vpow.pop %v1976
        %v1978 = vmul.f32 %v1905, 1.442695
        %v1979 = vpow.pop %v1978
        %v1980 = vmul.f32 %v1906, 1.442695
        %v1981 = vpow.pop %v1980
        %v1982 = vmul.f32 %v1907, 1.442695
        %v1983 = vpow.pop %v1982
        %v1984 = vmul.f32 %v1908, 1.442695
        %v1985 = vpow.pop %v1984
        %v1986 = vmul.f32 %v1909, 1.442695
        %v1987 = vpow.pop %v1986
        %v1988 = vmul.f32 %v1910, 1.442695
        %v1989 = vpow.pop %v1988
        %v1990 = vmul.f32 %v1911, 1.442695
        %v1991 = vpow.pop %v1990
        %v1992 = vmul.f32 %v1912, 1.442695
        %v1993 = vpow.pop %v1992
        %v1994 = vmul.f32 %v1913, 1.442695
        %v1995 = vpow.pop %v1994
        %v1996 = vmul.f32 %v1914, 1.442695
        %v1997 = vpow.pop %v1996
        %v1998 = vmul.f32 %v1915, 1.442695
        %v1999 = vpow.pop %v1998
        %v2000 = vmul.f32 %v1916, 1.442695
        %v2001 = vpow.pop %v2000
        %v2002 = vmul.f32 %v1917, 1.442695
        %v2003 = vpow.pop %v2002
        %v2004 = vmul.f32 %v1918, 1.442695
        %v2005 = vpow.pop %v2004
        %v2006 = vmul.f32 %v1919, 1.442695
        %v2007 = vpow.pop %v2006
        %v2008 = vmul.f32 %v1920, 1.442695
        %v2009 = vpow.pop %v2008
        %v2010 = vmul.f32 %v1921, 1.442695
        %v2011 = vpow.pop %v2010
        %v2012 = vmul.f32 %v1922, 1.442695
        %v2013 = vpow.pop %v2012
        %v2014 = vmul.f32 %v1923, 1.442695
        %v2015 = vpow.pop %v2014
        %v2016 = vmul.f32 %v1924, 1.442695
        %v2017 = vpow.pop %v2016
        %v2018 = vmul.f32 %v1925, 1.442695
        %v2019 = vpow.pop %v2018
        %v2020 = vmul.f32 %v1926, 1.442695
        %v2021 = vpow.pop %v2020
        %v2022 = vmul.f32 %v1927, 1.442695
        %v2023 = vpow.pop %v2022
        %v2024 = vmul.f32 %v1928, 1.442695
        %v2025 = vpow.pop %v2024
        %v2026 = vmul.f32 %v1929, 1.442695
        %v2027 = vpow.pop %v2026
        %v2028 = vmul.f32 %v1930, 1.442695
        %v2029 = vpow.pop %v2028
        %v2030 = vmul.f32 %v1931, 1.442695
        %v2031 = vpow.pop %v2030
        %v2032 = vmul.f32 %v1932, 1.442695
        %v2033 = vpow.pop %v2032
        %v2034 = vmul.f32 %v1933, 1.442695
        %v2035 = vpow.pop %v2034
        %v2036 = vmul.f32 %v1934, 1.442695
        %v2037 = vpow.pop %v2036
        %v2038 = vmul.f32 %v1935, 1.442695
        %v2039 = vpow.pop %v2038
        %v2040 = vmul.f32 %v1936, 1.442695
        %v2041 = vpow.pop %v2040
        %v2042 = vmul.f32 %v1937, 1.442695
        %v2043 = vpow.pop %v2042
        %v2044 = vmul.f32 %v1938, 1.442695
        %v2045 = vpow.pop %v2044
        %v2046 = vmul.f32 %v1939, 1.442695
        %v2047 = vpow.pop %v2046
        %v2048 = vmul.f32 %v1940, 1.442695
        %v2049 = vpow.pop %v2048
        %v2050 = vmul.f32 %v1941, 1.442695
        %v2051 = vpow.pop %v2050
        %v2052 = vmul.f32 %v1942, 1.442695
        %v2053 = vpow.pop %v2052
        %v2054 = vmul.f32 %v1943, 1.442695
        %v2055 = vpow.pop %v2054
        %v2056 = vmul.f32 %v1944, 1.442695
        %v2057 = vpow.pop %v2056
        %v2058 = vmul.f32 %v1945, 1.442695
        %v2059 = vpow.pop %v2058
        %v2060 = vmul.f32 %v1946, 1.442695
        %v2061 = vpow.pop %v2060
        %v2062 = vmul.f32 %v1947, 1.442695
        %v2063 = vpow.pop %v2062
        %v2064 = vmul.f32 %v1948, 1.442695
        %v2065 = vpow.pop %v2064
        %v2066 = vmul.f32 %v1949, 1.442695
        %v2067 = vpow.pop %v2066
        %v2068 = vmul.f32 %v1950, 1.442695
        %v2069 = vpow.pop %v2068
        %v2070 = vmul.f32 %v1951, 1.442695
        %v2071 = vpow.pop %v2070
        %v2072 = vmul.f32 %v1952, 1.442695
        %v2073 = vpow.pop %v2072
        %v2074 = vmul.f32 %v1953, 1.442695
        %v2075 = vpow.pop %v2074
        %v2076 = vmul.f32 %v1954, 1.442695
        %v2077 = vpow.pop %v2076
        %v2078 = vmul.f32 %v1955, 1.442695
        %v2079 = vpow.pop %v2078
        %v2080 = vmul.f32 %v1956, 1.442695
        %v2081 = vpow.pop %v2080
        %v2082 = vmul.f32 %v1957, 1.442695
        %v2083 = vpow.pop %v2082
        %v2084 = vmul.f32 %v1958, 1.442695
        %v2085 = vpow.pop %v2084
        %v2086 = vmul.f32 %v1959, 1.442695
        %v2087 = vpow.pop %v2086
        %v2088 = vadd.f32 %v1961, 1.0
        %v2089 = vadd.f32 %v1963, 1.0
        %v2090 = vadd.f32 %v1965, 1.0
        %v2091 = vadd.f32 %v1967, 1.0
        %v2092 = vadd.f32 %v1969, 1.0
        %v2093 = vadd.f32 %v1971, 1.0
        %v2094 = vadd.f32 %v1973, 1.0
        %v2095 = vadd.f32 %v1975, 1.0
        %v2096 = vadd.f32 %v1977, 1.0
        %v2097 = vadd.f32 %v1979, 1.0
        %v2098 = vadd.f32 %v1981, 1.0
        %v2099 = vadd.f32 %v1983, 1.0
        %v2100 = vadd.f32 %v1985, 1.0
        %v2101 = vadd.f32 %v1987, 1.0
        %v2102 = vadd.f32 %v1989, 1.0
        %v2103 = vadd.f32 %v1991, 1.0
        %v2104 = vadd.f32 %v1993, 1.0
        %v2105 = vadd.f32 %v1995, 1.0
        %v2106 = vadd.f32 %v1997, 1.0
        %v2107 = vadd.f32 %v1999, 1.0
        %v2108 = vadd.f32 %v2001, 1.0
        %v2109 = vadd.f32 %v2003, 1.0
        %v2110 = vadd.f32 %v2005, 1.0
        %v2111 = vadd.f32 %v2007, 1.0
        %v2112 = vadd.f32 %v2009, 1.0
        %v2113 = vadd.f32 %v2011, 1.0
        %v2114 = vadd.f32 %v2013, 1.0
        %v2115 = vadd.f32 %v2015, 1.0
        %v2116 = vadd.f32 %v2017, 1.0
        %v2117 = vadd.f32 %v2019, 1.0
        %v2118 = vadd.f32 %v2021, 1.0
        %v2119 = vadd.f32 %v2023, 1.0
        %v2120 = vadd.f32 %v2025, 1.0
        %v2121 = vadd.f32 %v2027, 1.0
        %v2122 = vadd.f32 %v2029, 1.0
        %v2123 = vadd.f32 %v2031, 1.0
        %v2124 = vadd.f32 %v2033, 1.0
        %v2125 = vadd.f32 %v2035, 1.0
        %v2126 = vadd.f32 %v2037, 1.0
        %v2127 = vadd.f32 %v2039, 1.0
        %v2128 = vadd.f32 %v2041, 1.0
        %v2129 = vadd.f32 %v2043, 1.0
        %v2130 = vadd.f32 %v2045, 1.0
        %v2131 = vadd.f32 %v2047, 1.0
        %v2132 = vadd.f32 %v2049, 1.0
        %v2133 = vadd.f32 %v2051, 1.0
        %v2134 = vadd.f32 %v2053, 1.0
        %v2135 = vadd.f32 %v2055, 1.0
        %v2136 = vadd.f32 %v2057, 1.0
        %v2137 = vadd.f32 %v2059, 1.0
        %v2138 = vadd.f32 %v2061, 1.0
        %v2139 = vadd.f32 %v2063, 1.0
        %v2140 = vadd.f32 %v2065, 1.0
        %v2141 = vadd.f32 %v2067, 1.0
        %v2142 = vadd.f32 %v2069, 1.0
        %v2143 = vadd.f32 %v2071, 1.0
        %v2144 = vadd.f32 %v2073, 1.0
        %v2145 = vadd.f32 %v2075, 1.0
        %v2146 = vadd.f32 %v2077, 1.0
        %v2147 = vadd.f32 %v2079, 1.0
        %v2148 = vadd.f32 %v2081, 1.0
        %v2149 = vadd.f32 %v2083, 1.0
        %v2150 = vadd.f32 %v2085, 1.0
        %v2151 = vadd.f32 %v2087, 1.0
        %v2152 = vrcp.pop %v2088
        %v2153 = vrcp.pop %v2089
        %v2154 = vrcp.pop %v2090
        %v2155 = vrcp.pop %v2091
        %v2156 = vrcp.pop %v2092
        %v2157 = vrcp.pop %v2093
        %v2158 = vrcp.pop %v2094
        %v2159 = vrcp.pop %v2095
        %v2160 = vrcp.pop %v2096
        %v2161 = vrcp.pop %v2097
        %v2162 = vrcp.pop %v2098
        %v2163 = vrcp.pop %v2099
        %v2164 = vrcp.pop %v2100
        %v2165 = vrcp.pop %v2101
        %v2166 = vrcp.pop %v2102
        %v2167 = vrcp.pop %v2103
        %v2168 = vrcp.pop %v2104
        %v2169 = vrcp.pop %v2105
        %v2170 = vrcp.pop %v2106
        %v2171 = vrcp.pop %v2107
        %v2172 = vrcp.pop %v2108
        %v2173 = vrcp.pop %v2109
        %v2174 = vrcp.pop %v2110
        %v2175 = vrcp.pop %v2111
        %v2176 = vrcp.pop %v2112
        %v2177 = vrcp.pop %v2113
        %v2178 = vrcp.pop %v2114
        %v2179 = vrcp.pop %v2115
        %v2180 = vrcp.pop %v2116
        %v2181 = vrcp.pop %v2117
        %v2182 = vrcp.pop %v2118
        %v2183 = vrcp.pop %v2119
        %v2184 = vrcp.pop %v2120
        %v2185 = vrcp.pop %v2121
        %v2186 = vrcp.pop %v2122
        %v2187 = vrcp.pop %v2123
        %v2188 = vrcp.pop %v2124
        %v2189 = vrcp.pop %v2125
        %v2190 = vrcp.pop %v2126
        %v2191 = vrcp.pop %v2127
        %v2192 = vrcp.pop %v2128
        %v2193 = vrcp.pop %v2129
        %v2194 = vrcp.pop %v2130
        %v2195 = vrcp.pop %v2131
        %v2196 = vrcp.pop %v2132
        %v2197 = vrcp.pop %v2133
        %v2198 = vrcp.pop %v2134
        %v2199 = vrcp.pop %v2135
        %v2200 = vrcp.pop %v2136
        %v2201 = vrcp.pop %v2137
        %v2202 = vrcp.pop %v2138
        %v2203 = vrcp.pop %v2139
        %v2204 = vrcp.pop %v2140
        %v2205 = vrcp.pop %v2141
        %v2206 = vrcp.pop %v2142
        %v2207 = vrcp.pop %v2143
        %v2208 = vrcp.pop %v2144
        %v2209 = vrcp.pop %v2145
        %v2210 = vrcp.pop %v2146
        %v2211 = vrcp.pop %v2147
        %v2212 = vrcp.pop %v2148
        %v2213 = vrcp.pop %v2149
        %v2214 = vrcp.pop %v2150
        %v2215 = vrcp.pop %v2151
        %v2216 = vmul.f32 %v2088, %v2152
        %v2217 = vmul.f32 %v2089, %v2153
        %v2218 = vmul.f32 %v2090, %v2154
        %v2219 = vmul.f32 %v2091, %v2155
        %v2220 = vmul.f32 %v2092, %v2156
        %v2221 = vmul.f32 %v2093, %v2157
        %v2222 = vmul.f32 %v2094, %v2158
        %v2223 = vmul.f32 %v2095, %v2159
        %v2224 = vmul.f32 %v2096, %v2160
        %v2225 = vmul.f32 %v2097, %v2161
        %v2226 = vmul.f32 %v2098, %v2162
        %v2227 = vmul.f32 %v2099, %v2163
        %v2228 = vmul.f32 %v2100, %v2164
        %v2229 = vmul.f32 %v2101, %v2165
        %v2230 = vmul.f32 %v2102, %v2166
        %v2231 = vmul.f32 %v2103, %v2167
        %v2232 = vmul.f32 %v2104, %v2168
        %v2233 = vmul.f32 %v2105, %v2169
        %v2234 = vmul.f32 %v2106, %v2170
        %v2235 = vmul.f32 %v2107, %v2171
        %v2236 = vmul.f32 %v2108, %v2172
        %v2237 = vmul.f32 %v2109, %v2173
        %v2238 = vmul.f32 %v2110, %v2174
        %v2239 = vmul.f32 %v2111, %v2175
        %v2240 = vmul.f32 %v2112, %v2176
        %v2241 = vmul.f32 %v2113, %v2177
        %v2242 = vmul.f32 %v2114, %v2178
        %v2243 = vmul.f32 %v2115, %v2179
        %v2244 = vmul.f32 %v2116, %v2180
        %v2245 = vmul.f32 %v2117, %v2181
        %v2246 = vmul.f32 %v2118, %v2182
        %v2247 = vmul.f32 %v2119, %v2183
        %v2248 = vmul.f32 %v2120, %v2184
        %v2249 = vmul.f32 %v2121, %v2185
        %v2250 = vmul.f32 %v2122, %v2186
        %v2251 = vmul.f32 %v2123, %v2187
        %v2252 = vmul.f32 %v2124, %v2188
        %v2253 = vmul.f32 %v2125, %v2189
        %v2254 = vmul.f32 %v2126, %v2190
        %v2255 = vmul.f32 %v2127, %v2191
        %v2256 = vmul.f32 %v2128, %v2192
        %v2257 = vmul.f32 %v2129, %v2193
        %v2258 = vmul.f32 %v2130, %v2194
        %v2259 = vmul.f32 %v2131, %v2195
        %v2260 = vmul.f32 %v2132, %v2196
        %v2261 = vmul.f32 %v2133, %v2197
        %v2262 = vmul.f32 %v2134, %v2198
        %v2263 = vmul.f32 %v2135, %v2199
        %v2264 = vmul.f32 %v2136, %v2200
        %v2265 = vmul.f32 %v2137, %v2201
        %v2266 = vmul.f32 %v2138, %v2202
        %v2267 = vmul.f32 %v2139, %v2203
        %v2268 = vmul.f32 %v2140, %v2204
        %v2269 = vmul.f32 %v2141, %v2205
        %v2270 = vmul.f32 %v2142, %v2206
        %v2271 = vmul.f32 %v2143, %v2207
        %v2272 = vmul.f32 %v2144, %v2208
        %v2273 = vmul.f32 %v2145, %v2209
        %v2274 = vmul.f32 %v2146, %v2210
        %v2275 = vmul.f32 %v2147, %v2211
        %v2276 = vmul.f32 %v2148, %v2212
        %v2277 = vmul.f32 %v2149, %v2213
        %v2278 = vmul.f32 %v2150, %v2214
        %v2279 = vmul.f32 %v2151, %v2215
        %v2280 = vsub.f32 2.0, %v2216
        %v2281 = vsub.f32 2.0, %v2217
        %v2282 = vsub.f32 2.0, %v2218
        %v2283 = vsub.f32 2.0, %v2219
        %v2284 = vsub.f32 2.0, %v2220
        %v2285 = vsub.f32 2.0, %v2221
        %v2286 = vsub.f32 2.0, %v2222
        %v2287 = vsub.f32 2.0, %v2223
        %v2288 = vsub.f32 2.0, %v2224
        %v2289 = vsub.f32 2.0, %v2225
        %v2290 = vsub.f32 2.0, %v2226
        %v2291 = vsub.f32 2.0, %v2227
        %v2292 = vsub.f32 2.0, %v2228
        %v2293 = vsub.f32 2.0, %v2229
        %v2294 = vsub.f32 2.0, %v2230
        %v2295 = vsub.f32 2.0, %v2231
        %v2296 = vsub.f32 2.0, %v2232
        %v2297 = vsub.f32 2.0, %v2233
        %v2298 = vsub.f32 2.0, %v2234
        %v2299 = vsub.f32 2.0, %v2235
        %v2300 = vsub.f32 2.0, %v2236
        %v2301 = vsub.f32 2.0, %v2237
        %v2302 = vsub.f32 2.0, %v2238
        %v2303 = vsub.f32 2.0, %v2239
        %v2304 = vsub.f32 2.0, %v2240
        %v2305 = vsub.f32 2.0, %v2241
        %v2306 = vsub.f32 2.0, %v2242
        %v2307 = vsub.f32 2.0, %v2243
        %v2308 = vsub.f32 2.0, %v2244
        %v2309 = vsub.f32 2.0, %v2245
        %v2310 = vsub.f32 2.0, %v2246
        %v2311 = vsub.f32 2.0, %v2247
        %v2312 = vsub.f32 2.0, %v2248
        %v2313 = vsub.f32 2.0, %v2249
        %v2314 = vsub.f32 2.0, %v2250
        %v2315 = vsub.f32 2.0, %v2251
        %v2316 = vsub.f32 2.0, %v2252
        %v2317 = vsub.f32 2.0, %v2253
        %v2318 = vsub.f32 2.0, %v2254
        %v2319 = vsub.f32 2.0, %v2255
        %v2320 = vsub.f32 2.0, %v2256
        %v2321 = vsub.f32 2.0, %v2257
        %v2322 = vsub.f32 2.0, %v2258
        %v2323 = vsub.f32 2.0, %v2259
        %v2324 = vsub.f32 2.0, %v2260
        %v2325 = vsub.f32 2.0, %v2261
        %v2326 = vsub.f32 2.0, %v2262
        %v2327 = vsub.f32 2.0, %v2263
        %v2328 = vsub.f32 2.0, %v2264
        %v2329 = vsub.f32 2.0, %v2265
        %v2330 = vsub.f32 2.0, %v2266
        %v2331 = vsub.f32 2.0, %v2267
        %v2332 = vsub.f32 2.0, %v2268
        %v2333 = vsub.f32 2.0, %v2269
        %v2334 = vsub.f32 2.0, %v2270
        %v2335 = vsub.f32 2.0, %v2271
        %v2336 = vsub.f32 2.0, %v2272
        %v2337 = vsub.f32 2.0, %v2273
        %v2338 = vsub.f32 2.0, %v2274
        %v2339 = vsub.f32 2.0, %v2275
        %v2340 = vsub.f32 2.0, %v2276
        %v2341 = vsub.f32 2.0, %v2277
        %v2342 = vsub.f32 2.0, %v2278
        %v2343 = vsub.f32 2.0, %v2279
        %v2344 = vmul.f32 %v2152, %v2280
        %v2345 = vmul.f32 %v2153, %v2281
        %v2346 = vmul.f32 %v2154, %v2282
        %v2347 = vmul.f32 %v2155, %v2283
        %v2348 = vmul.f32 %v2156, %v2284
        %v2349 = vmul.f32 %v2157, %v2285
        %v2350 = vmul.f32 %v2158, %v2286
        %v2351 = vmul.f32 %v2159, %v2287
        %v2352 = vmul.f32 %v2160, %v2288
        %v2353 = vmul.f32 %v2161, %v2289
        %v2354 = vmul.f32 %v2162, %v2290
        %v2355 = vmul.f32 %v2163, %v2291
        %v2356 = vmul.f32 %v2164, %v2292
        %v2357 = vmul.f32 %v2165, %v2293
        %v2358 = vmul.f32 %v2166, %v2294
        %v2359 = vmul.f32 %v2167, %v2295
        %v2360 = vmul.f32 %v2168, %v2296
        %v2361 = vmul.f32 %v2169, %v2297
        %v2362 = vmul.f32 %v2170, %v2298
        %v2363 = vmul.f32 %v2171, %v2299
        %v2364 = vmul.f32 %v2172, %v2300
        %v2365 = vmul.f32 %v2173, %v2301
        %v2366 = vmul.f32 %v2174, %v2302
        %v2367 = vmul.f32 %v2175, %v2303
        %v2368 = vmul.f32 %v2176, %v2304
        %v2369 = vmul.f32 %v2177, %v2305
        %v2370 = vmul.f32 %v2178, %v2306
        %v2371 = vmul.f32 %v2179, %v2307
        %v2372 = vmul.f32 %v2180, %v2308
        %v2373 = vmul.f32 %v2181, %v2309
        %v2374 = vmul.f32 %v2182, %v2310
        %v2375 = vmul.f32 %v2183, %v2311
        %v2376 = vmul.f32 %v2184, %v2312
        %v2377 = vmul.f32 %v2185, %v2313
        %v2378 = vmul.f32 %v2186, %v2314
        %v2379 = vmul.f32 %v2187, %v2315
        %v2380 = vmul.f32 %v2188, %v2316
        %v2381 = vmul.f32 %v2189, %v2317
        %v2382 = vmul.f32 %v2190, %v2318
        %v2383 = vmul.f32 %v2191, %v2319
        %v2384 = vmul.f32 %v2192, %v2320
        %v2385 = vmul.f32 %v2193, %v2321
        %v2386 = vmul.f32 %v2194, %v2322
        %v2387 = vmul.f32 %v2195, %v2323
        %v2388 = vmul.f32 %v2196, %v2324
        %v2389 = vmul.f32 %v2197, %v2325
        %v2390 = vmul.f32 %v2198, %v2326
        %v2391 = vmul.f32 %v2199, %v2327
        %v2392 = vmul.f32 %v2200, %v2328
        %v2393 = vmul.f32 %v2201, %v2329
        %v2394 = vmul.f32 %v2202, %v2330
        %v2395 = vmul.f32 %v2203, %v2331
        %v2396 = vmul.f32 %v2204, %v2332
        %v2397 = vmul.f32 %v2205, %v2333
        %v2398 = vmul.f32 %v2206, %v2334
        %v2399 = vmul.f32 %v2207, %v2335
        %v2400 = vmul.f32 %v2208, %v2336
        %v2401 = vmul.f32 %v2209, %v2337
        %v2402 = vmul.f32 %v2210, %v2338
        %v2403 = vmul.f32 %v2211, %v2339
        %v2404 = vmul.f32 %v2212, %v2340
        %v2405 = vmul.f32 %v2213, %v2341
        %v2406 = vmul.f32 %v2214, %v2342
        %v2407 = vmul.f32 %v2215, %v2343
        %2408 = vst [vmem:[%s392] sm:$0xff] %v2344
        %2409 = vst [vmem:[%s392 + $0x8] sm:$0xff] %v2345
        %2410 = vst [vmem:[%s392 + $0x10] sm:$0xff] %v2346
        %2411 = vst [vmem:[%s392 + $0x18] sm:$0xff] %v2347
        %2412 = vst [vmem:[%s392 + $0x20] sm:$0xff] %v2348
        %2413 = vst [vmem:[%s392 + $0x28] sm:$0xff] %v2349
        %2414 = vst [vmem:[%s392 + $0x30] sm:$0xff] %v2350
        %2415 = vst [vmem:[%s392 + $0x38] sm:$0xff] %v2351
        %2416 = vst [vmem:[%s392 + $0x40] sm:$0xff] %v2352
        %2417 = vst [vmem:[%s392 + $0x48] sm:$0xff] %v2353
        %2418 = vst [vmem:[%s392 + $0x50] sm:$0xff] %v2354
        %2419 = vst [vmem:[%s392 + $0x58] sm:$0xff] %v2355
        %2420 = vst [vmem:[%s392 + $0x60] sm:$0xff] %v2356
        %2421 = vst [vmem:[%s392 + $0x68] sm:$0xff] %v2357
        %2422 = vst [vmem:[%s392 + $0x70] sm:$0xff] %v2358
        %2423 = vst [vmem:[%s392 + $0x78] sm:$0xff] %v2359
        %2424 = vst [vmem:[%s392 + $0x80] sm:$0xff] %v2360
        %2425 = vst [vmem:[%s392 + $0x88] sm:$0xff] %v2361
        %2426 = vst [vmem:[%s392 + $0x90] sm:$0xff] %v2362
        %2427 = vst [vmem:[%s392 + $0x98] sm:$0xff] %v2363
        %2428 = vst [vmem:[%s392 + $0xa0] sm:$0xff] %v2364
        %2429 = vst [vmem:[%s392 + $0xa8] sm:$0xff] %v2365
        %2430 = vst [vmem:[%s392 + $0xb0] sm:$0xff] %v2366
        %2431 = vst [vmem:[%s392 + $0xb8] sm:$0xff] %v2367
        %2432 = vst [vmem:[%s392 + $0xc0] sm:$0xff] %v2368
        %2433 = vst [vmem:[%s392 + $0xc8] sm:$0xff] %v2369
        %2434 = vst [vmem:[%s392 + $0xd0] sm:$0xff] %v2370
        %2435 = vst [vmem:[%s392 + $0xd8] sm:$0xff] %v2371
        %2436 = vst [vmem:[%s392 + $0xe0] sm:$0xff] %v2372
        %2437 = vst [vmem:[%s392 + $0xe8] sm:$0xff] %v2373
        %2438 = vst [vmem:[%s392 + $0xf0] sm:$0xff] %v2374
        %2439 = vst [vmem:[%s392 + $0xf8] sm:$0xff] %v2375
        %2440 = vst [vmem:[%s392 + $0x100] sm:$0xff] %v2376
        %2441 = vst [vmem:[%s392 + $0x108] sm:$0xff] %v2377
        %2442 = vst [vmem:[%s392 + $0x110] sm:$0xff] %v2378
        %2443 = vst [vmem:[%s392 + $0x118] sm:$0xff] %v2379
        %2444 = vst [vmem:[%s392 + $0x120] sm:$0xff] %v2380
        %2445 = vst [vmem:[%s392 + $0x128] sm:$0xff] %v2381
        %2446 = vst [vmem:[%s392 + $0x130] sm:$0xff] %v2382
        %2447 = vst [vmem:[%s392 + $0x138] sm:$0xff] %v2383
        %2448 = vst [vmem:[%s392 + $0x140] sm:$0xff] %v2384
        %2449 = vst [vmem:[%s392 + $0x148] sm:$0xff] %v2385
        %2450 = vst [vmem:[%s392 + $0x150] sm:$0xff] %v2386
        %2451 = vst [vmem:[%s392 + $0x158] sm:$0xff] %v2387
        %2452 = vst [vmem:[%s392 + $0x160] sm:$0xff] %v2388
        %2453 = vst [vmem:[%s392 + $0x168] sm:$0xff] %v2389
        %2454 = vst [vmem:[%s392 + $0x170] sm:$0xff] %v2390
        %2455 = vst [vmem:[%s392 + $0x178] sm:$0xff] %v2391
        %2456 = vst [vmem:[%s392 + $0x180] sm:$0xff] %v2392
        %2457 = vst [vmem:[%s392 + $0x188] sm:$0xff] %v2393
        %2458 = vst [vmem:[%s392 + $0x190] sm:$0xff] %v2394
        %2459 = vst [vmem:[%s392 + $0x198] sm:$0xff] %v2395
        %2460 = vst [vmem:[%s392 + $0x1a0] sm:$0xff] %v2396
        %2461 = vst [vmem:[%s392 + $0x1a8] sm:$0xff] %v2397
        %2462 = vst [vmem:[%s392 + $0x1b0] sm:$0xff] %v2398
        %2463 = vst [vmem:[%s392 + $0x1b8] sm:$0xff] %v2399
        %2464 = vst [vmem:[%s392 + $0x1c0] sm:$0xff] %v2400
        %2465 = vst [vmem:[%s392 + $0x1c8] sm:$0xff] %v2401
        %2466 = vst [vmem:[%s392 + $0x1d0] sm:$0xff] %v2402
        %2467 = vst [vmem:[%s392 + $0x1d8] sm:$0xff] %v2403
        %2468 = vst [vmem:[%s392 + $0x1e0] sm:$0xff] %v2404
        %2469 = vst [vmem:[%s392 + $0x1e8] sm:$0xff] %v2405
        %2470 = vst [vmem:[%s392 + $0x1f0] sm:$0xff] %v2406
        %2471 = vst [vmem:[%s392 + $0x1f8] sm:$0xff] %v2407
        %s2472 = sand.u32 %s251, 1
        %s2473 = scalar_lea.sflag [#allocation4], %s2472
        %s2474 = sand.u32 %s251, 1
        %s2475 = smul.addr %s2474, 512
        %s2476 = scalar_lea.vmem [#allocation7], %s2475
        // Predicated region
        $region69: #{tpu_custom_call.1} parent=59 // pred_check
          %p2477 = pneg %p261
        $region70: #{tpu_custom_call.1} parent=59 // pred_check_branch
          %2479 = sbr.rel (%p2477) target = $region72
        $region71: #{tpu_custom_call.1} parent=59 // pred_region
          %s2480 = smul.u32 8, %s28
          %s2482 = ssub.s32 8192, 8192
          %2483 = vsyncadd %s2473, %s2482
          %s2484 = smul.addr %s2480, 8
          %s2485 = smul.addr %s2484, 128
          %s2486 = scalar_lea.hbm %s10, %s2485
          %s2487 = sshll.u32 %s2476, 4
          %s2488 = int_to_ptr.vmem [resolvable:$true] %s2487
          %2493 = dma.vmem_to_hbm [thread:$0]  %s2488, 8192, %s2486, %s2473, 256, 256, 16
        $region72: #{tpu_custom_call.1} parent=59 // pred_fallthru
          _
      $region60: #{tpu_custom_call.1} parent=5 // pred_fallthru
        _
      %p2494 = scmp.le.s32.totalorder 2, %s23
      // Predicated region
      $region73: #{tpu_custom_call.1} parent=5 // pred_check
        %p2495 = pneg %p2494
      $region74: #{tpu_custom_call.1} parent=5 // pred_check_branch
        %2497 = sbr.rel (%p2495) target = $region76
      $region75: #{tpu_custom_call.1} parent=5 // pred_region
        %s2498 = ssub.s32 %s23, 2
        // Predicated region
        $region77: #{tpu_custom_call.1} parent=75 // pred_check
          %p2499 = pneg %p267
        $region78: #{tpu_custom_call.1} parent=75 // pred_check_branch
          %2501 = sbr.rel (%p2499) target = $region80
        $region79: #{tpu_custom_call.1} parent=75 // pred_region
          %s2502 = sand.u32 %s252, 1
          %s2503 = scalar_lea.sflag [#allocation4], %s2502
          %s2504 = sand.u32 %s252, 1
          %s2505 = smul.addr %s2504, 512
          %s2506 = scalar_lea.vmem [#allocation7], %s2505
          %2507 = dma.done %s2503, 8192
        $region80: #{tpu_custom_call.1} parent=75 // pred_fallthru
          _
      $region76: #{tpu_custom_call.1} parent=5 // pred_fallthru
        _
    $region6: #{tpu_custom_call.1} parent=1 // loop_footer
      %s27 = sadd.s32 1, %s23
    $region7: #{tpu_custom_call.1} parent=1 // loop_footer_branch
      %22 = sbr.rel target = $region3
    $region8: #{tpu_custom_call.1} parent=1 // loop_exit
      _
    %2508 = vsyncpa [#allocation3], 1
    %s2509 = scalar_lea.sflag [#allocation3], 1
    %2510 = vsyncpa %s2509, 1
    %2511 = vsyncpa [#allocation4], 1
    %s2512 = scalar_lea.sflag [#allocation4], 1
    %2513 = vsyncpa %s2512, 1
    %2514 = vsyncpa [#allocation5], 1
    %s2515 = scalar_lea.sflag [#allocation5], 1
    %2516 = vsyncpa %s2515, 1

</llo_original>
